<compile_context>
chip_gen: v7x
topology: tpu7x:2x2x1
jax: 0.10.0
libtpu: 0.0.40
codegen_flags: <defaults>
</compile_context>

<pallas_src>
import jax
import jax.numpy as jnp
from jax import lax
from jax.experimental import pallas as pl
from jax.experimental.pallas import tpu as pltpu


def _round_up(x, m):
    return (x + m - 1) // m * m


# ----------------------------------------------------------------------------
# Kernel 1: fused Conv3x3(pad=1) + bias + ReLU + MaxPool2x2 as an MXU matmul.
# ----------------------------------------------------------------------------
def _conv_relu_pool_kernel(p_ref, w_ref, b_ref, o_ref):
    # p_ref: (4, TR, K) bf16 -- 4 pool taps x TR pooled-output rows x patch feats
    # w_ref: (K, CO)    bf16 -- conv weight, (kh, kw, cin) x cout
    # b_ref: (1, CO)    f32
    # o_ref: (TR, CO)   f32  -- pooled, biased, ReLU'd output rows
    w = w_ref[...]
    m = jnp.dot(p_ref[0], w, preferred_element_type=jnp.float32)
    for t in range(1, 4):
        m = jnp.maximum(m, jnp.dot(p_ref[t], w, preferred_element_type=jnp.float32))
    o_ref[...] = jnp.maximum(m + b_ref[...], 0.0).astype(o_ref.dtype)


def conv3x3_relu_maxpool(x_nhwc, w_oihw, bias, *, row_tile_cap=256):
    """Conv2d(Cin,Cout,3,stride=1,pad=1) + ReLU + MaxPool2d(2,2) on NHWC input."""
    N, H, W, CI = x_nhwc.shape
    assert H % 2 == 0 and W % 2 == 0, "VGG block expects even spatial dims"
    CO = w_oihw.shape[0]
    OH, OW = H, W
    PH, PW = OH // 2, OW // 2
    K = 9 * CI

    # --- glue (XLA): im2col patches, grouped by 2x2 pool tap ---
    # TODO(synk): fold patch extraction into the kernel (row-band DMA with
    # memory_space=pl.ANY) to avoid materializing the 9x im2col expansion in HBM.
    xp = jnp.pad(x_nhwc, ((0, 0), (1, 1), (1, 1), (0, 0)))
    taps = [xp[:, kh:kh + OH, kw:kw + OW, :] for kh in range(3) for kw in range(3)]
    patches = jnp.stack(taps, axis=3).reshape(N, OH, OW, K)  # feature order (kh,kw,ci)
    groups = [patches[:, dh::2, dw::2, :].reshape(N * PH * PW, K)
              for dh in range(2) for dw in range(2)]
    p = jnp.stack(groups, axis=0)                             # (4, R, K)

    R = N * PH * PW
    tr = min(_round_up(R, 8), row_tile_cap)
    R_pad = _round_up(R, tr)
    if R_pad != R:
        p = jnp.pad(p, ((0, 0), (0, R_pad - R), (0, 0)))
    p = p.astype(jnp.bfloat16)                                # halve patch DMA bytes

    w2d = jnp.transpose(w_oihw, (2, 3, 1, 0)).reshape(K, CO).astype(jnp.bfloat16)
    b2d = bias.reshape(1, CO).astype(jnp.float32)

    out = pl.pallas_call(
        _conv_relu_pool_kernel,
        out_shape=jax.ShapeDtypeStruct((R_pad, CO), jnp.float32),
        grid=(R_pad // tr,),
        in_specs=[
            pl.BlockSpec((4, tr, K), lambda i: (0, i, 0)),
            pl.BlockSpec((K, CO), lambda i: (0, 0)),
            pl.BlockSpec((1, CO), lambda i: (0, 0)),
        ],
        out_specs=pl.BlockSpec((tr, CO), lambda i: (i, 0)),
        compiler_params=pltpu.CompilerParams(dimension_semantics=("parallel",)),
    )(p, w2d, b2d)

    return out[:R].reshape(N, PH, PW, CO)


# ----------------------------------------------------------------------------
# Kernel 2: classifier head Linear(512,512) + ReLU + Linear(512,10), fused.
# (Dropout layers are identity at inference.)
# ----------------------------------------------------------------------------
def _mlp_head_kernel(x_ref, w1_ref, b1_ref, w2_ref, b2_ref, o_ref):
    h = jnp.dot(x_ref[...], w1_ref[...], preferred_element_type=jnp.float32)
    h = jnp.maximum(h + b1_ref[...], 0.0)
    y = jnp.dot(h.astype(w2_ref.dtype), w2_ref[...], preferred_element_type=jnp.float32)
    o_ref[...] = (y + b2_ref[...]).astype(o_ref.dtype)


def mlp_head(x, fc1, fc2, *, row_tile_cap=512):
    w1, b1 = fc1                      # PyTorch Linear layout: (out, in), (out,)
    w2, b2 = fc2
    B, D = x.shape
    Hd = w1.shape[0]
    O = w2.shape[0]
    O_pad = _round_up(O, 128)         # lane-dense output stores (pad 10 -> 128)
    tb = min(_round_up(B, 8), row_tile_cap)
    B_pad = _round_up(B, tb)

    xb = jnp.pad(x, ((0, B_pad - B), (0, 0))).astype(jnp.bfloat16)
    w1t = jnp.transpose(w1).astype(jnp.bfloat16)                                # (D, Hd)
    w2t = jnp.pad(jnp.transpose(w2), ((0, 0), (0, O_pad - O))).astype(jnp.bfloat16)
    b1r = b1.reshape(1, Hd).astype(jnp.float32)
    b2r = jnp.pad(b2, (0, O_pad - O)).reshape(1, O_pad).astype(jnp.float32)

    out = pl.pallas_call(
        _mlp_head_kernel,
        out_shape=jax.ShapeDtypeStruct((B_pad, O_pad), jnp.float32),
        grid=(B_pad // tb,),
        in_specs=[
            pl.BlockSpec((tb, D), lambda i: (i, 0)),
            pl.BlockSpec((D, Hd), lambda i: (0, 0)),
            pl.BlockSpec((1, Hd), lambda i: (0, 0)),
            pl.BlockSpec((Hd, O_pad), lambda i: (0, 0)),
            pl.BlockSpec((1, O_pad), lambda i: (0, 0)),
        ],
        out_specs=pl.BlockSpec((tb, O_pad), lambda i: (i, 0)),
        compiler_params=pltpu.CompilerParams(dimension_semantics=("parallel",)),
    )(xb, w1t, b1r, w2t, b2r)
    return out[:B, :O]


# ----------------------------------------------------------------------------
# Full VGG_server_fn forward (inference).
# ----------------------------------------------------------------------------
def vgg_server_forward(x_nchw, conv_params, fc1, fc2):
    x = jnp.transpose(x_nchw, (0, 2, 3, 1))            # NCHW -> NHWC for conv kernels
    for (w, b) in conv_params:                         # self.features (server tail)
        x = conv3x3_relu_maxpool(x, w, b)
    n = x.shape[0]
    feat = jnp.transpose(x, (0, 3, 1, 2)).reshape(n, -1)   # x.view(x.size(0), -1)
    return mlp_head(feat, fc1, fc2)                    # classifier (dropout = identity)


# ----------------------------------------------------------------------------
# Reference (same bf16/f32 precision, pure XLA) for verification.
# ----------------------------------------------------------------------------
def reference_forward(x_nchw, conv_params, fc1, fc2):
    x = x_nchw
    for (w, b) in conv_params:
        y = lax.conv_general_dilated(
            x.astype(jnp.bfloat16), w.astype(jnp.bfloat16),
            window_strides=(1, 1), padding=((1, 1), (1, 1)),
            dimension_numbers=("NCHW", "OIHW", "NCHW"),
            preferred_element_type=jnp.float32)
        y = jnp.maximum(y + b.reshape(1, -1, 1, 1), 0.0)
        x = lax.reduce_window(y, -jnp.inf, lax.max,
                              window_dimensions=(1, 1, 2, 2),
                              window_strides=(1, 1, 2, 2), padding="VALID")
    x = x.reshape(x.shape[0], -1)
    w1, b1 = fc1
    w2, b2 = fc2
    h = jnp.dot(x.astype(jnp.bfloat16), jnp.transpose(w1).astype(jnp.bfloat16),
                preferred_element_type=jnp.float32) + b1
    h = jnp.maximum(h, 0.0)
    return jnp.dot(h.astype(jnp.bfloat16), jnp.transpose(w2).astype(jnp.bfloat16),
                   preferred_element_type=jnp.float32) + b2


if __name__ == "__main__":
    key = jax.random.PRNGKey(0)
    ks = jax.random.split(key, 8)

    # Small server-side split: intermediate activation (N, 128, 4, 4), then a
    # representative VGG tail 128 -> 256 -> 512 with 1x1 final spatial so that
    # the flattened feature dim is 512 (matches Linear(512, 512)).
    N, C0, H0, W0 = 2, 128, 4, 4
    x = jax.random.normal(ks[0], (N, C0, H0, W0), dtype=jnp.float32)

    conv_params = []
    cin = C0
    for i, cout in enumerate((256, 512)):
        std = (2.0 / (9 * cout)) ** 0.5                # PyTorch init in the spec
        w = jax.random.normal(ks[1 + i], (cout, cin, 3, 3), dtype=jnp.float32) * std
        b = jax.random.normal(ks[3 + i], (cout,), dtype=jnp.float32) * 0.01
        conv_params.append((w, b))
        cin = cout

    w1 = jax.random.normal(ks[5], (512, 512), dtype=jnp.float32) * 0.03
    b1 = jax.random.normal(ks[6], (512,), dtype=jnp.float32) * 0.01
    w2 = jax.random.normal(ks[7], (10, 512), dtype=jnp.float32) * 0.03
    b2 = jnp.zeros((10,), dtype=jnp.float32)

    out = vgg_server_forward(x, conv_params, (w1, b1), (w2, b2))
    out = jax.block_until_ready(out)
    assert out.shape == (N, 10), out.shape

    ref = reference_forward(x, conv_params, (w1, b1), (w2, b2))
    err = float(jnp.max(jnp.abs(out - ref)))
    assert err < 2e-2, f"max abs error {err}"

    print("KERNEL_OK")
</pallas_src>

<mosaic_0001>
module attributes {stable_mosaic.version = 11 : i64} {
  func.func @_conv_relu_pool_kernel(%arg0: i32, %arg1: memref<4x8x1152xbf16, #tpu.memory_space<vmem>>, %arg2: memref<1152x256xbf16, #tpu.memory_space<vmem>>, %arg3: memref<1x256xf32, #tpu.memory_space<vmem>>, %arg4: memref<8x256xf32, #tpu.memory_space<vmem>>) attributes {dimension_semantics = [#tpu.dimension_semantics<parallel>], iteration_bounds = array<i64: 1>, scalar_prefetch = 0 : i64, scratch_operands = 0 : i64, tpu.core_type = #tpu.core_type<tc>, window_params = [{transform_indices = @transform_0, window_bounds = array<i64: 4, 8, 1152>}, {pipeline_mode = #tpu.pipeline_mode<synchronous>, transform_indices = @transform_1, window_bounds = array<i64: 1152, 256>}, {pipeline_mode = #tpu.pipeline_mode<synchronous>, transform_indices = @transform_2, window_bounds = array<i64: 1, 256>}, {transform_indices = @transform_3, window_bounds = array<i64: 8, 256>}]} {
    %c0 = arith.constant 0 : index
    %c0_0 = arith.constant 0 : index
    %0 = vector.load %arg2[%c0, %c0_0] : memref<1152x256xbf16, #tpu.memory_space<vmem>>, vector<1152x256xbf16>
    %c0_1 = arith.constant 0 : index
    %c0_2 = arith.constant 0 : index
    %c0_3 = arith.constant 0 : index
    %1 = vector.load %arg1[%c0_1, %c0_2, %c0_3] : memref<4x8x1152xbf16, #tpu.memory_space<vmem>>, vector<1x8x1152xbf16>
    %2 = vector.shape_cast %1 : vector<1x8x1152xbf16> to vector<8x1152xbf16>
    %cst = arith.constant dense<0.000000e+00> : vector<8x256xf32>
    %3 = tpu.matmul %2, %0, %cst {dimension_numbers = #tpu.dot_dimension_numbers<[1], [0], [0], [1], [0, 0, 1, 1], [], []>} : vector<8x1152xbf16>, vector<1152x256xbf16>, vector<8x256xf32> -> vector<8x256xf32>
    %c1 = arith.constant 1 : index
    %c0_4 = arith.constant 0 : index
    %c0_5 = arith.constant 0 : index
    %4 = vector.load %arg1[%c1, %c0_4, %c0_5] : memref<4x8x1152xbf16, #tpu.memory_space<vmem>>, vector<1x8x1152xbf16>
    %5 = vector.shape_cast %4 : vector<1x8x1152xbf16> to vector<8x1152xbf16>
    %cst_6 = arith.constant dense<0.000000e+00> : vector<8x256xf32>
    %6 = tpu.matmul %5, %0, %cst_6 {dimension_numbers = #tpu.dot_dimension_numbers<[1], [0], [0], [1], [0, 0, 1, 1], [], []>} : vector<8x1152xbf16>, vector<1152x256xbf16>, vector<8x256xf32> -> vector<8x256xf32>
    %7 = arith.maximumf %3, %6 : vector<8x256xf32>
    %c2 = arith.constant 2 : index
    %c0_7 = arith.constant 0 : index
    %c0_8 = arith.constant 0 : index
    %8 = vector.load %arg1[%c2, %c0_7, %c0_8] : memref<4x8x1152xbf16, #tpu.memory_space<vmem>>, vector<1x8x1152xbf16>
    %9 = vector.shape_cast %8 : vector<1x8x1152xbf16> to vector<8x1152xbf16>
    %cst_9 = arith.constant dense<0.000000e+00> : vector<8x256xf32>
    %10 = tpu.matmul %9, %0, %cst_9 {dimension_numbers = #tpu.dot_dimension_numbers<[1], [0], [0], [1], [0, 0, 1, 1], [], []>} : vector<8x1152xbf16>, vector<1152x256xbf16>, vector<8x256xf32> -> vector<8x256xf32>
    %11 = arith.maximumf %7, %10 : vector<8x256xf32>
    %c3 = arith.constant 3 : index
    %c0_10 = arith.constant 0 : index
    %c0_11 = arith.constant 0 : index
    %12 = vector.load %arg1[%c3, %c0_10, %c0_11] : memref<4x8x1152xbf16, #tpu.memory_space<vmem>>, vector<1x8x1152xbf16>
    %13 = vector.shape_cast %12 : vector<1x8x1152xbf16> to vector<8x1152xbf16>
    %cst_12 = arith.constant dense<0.000000e+00> : vector<8x256xf32>
    %14 = tpu.matmul %13, %0, %cst_12 {dimension_numbers = #tpu.dot_dimension_numbers<[1], [0], [0], [1], [0, 0, 1, 1], [], []>} : vector<8x1152xbf16>, vector<1152x256xbf16>, vector<8x256xf32> -> vector<8x256xf32>
    %15 = arith.maximumf %11, %14 : vector<8x256xf32>
    %c0_13 = arith.constant 0 : index
    %c0_14 = arith.constant 0 : index
    %16 = vector.load %arg3[%c0_13, %c0_14] : memref<1x256xf32, #tpu.memory_space<vmem>>, vector<1x256xf32>
    %17 = vector.broadcast %16 : vector<1x256xf32> to vector<8x256xf32>
    %18 = arith.addf %15, %17 : vector<8x256xf32>
    %cst_15 = arith.constant 0.000000e+00 : f32
    %19 = vector.broadcast %cst_15 : f32 to vector<8x256xf32>
    %20 = arith.maximumf %18, %19 : vector<8x256xf32>
    %c0_16 = arith.constant 0 : index
    %c0_17 = arith.constant 0 : index
    %21 = vector.load %arg4[%c0_16, %c0_17] : memref<8x256xf32, #tpu.memory_space<vmem>>, vector<8x256xf32>
    tpu.vector_store %arg4[%c0_16, %c0_17], %20 {strides = array<i32>} : memref<8x256xf32, #tpu.memory_space<vmem>>, vector<8x256xf32>,
    return
  }
  func.func @transform_0(%arg0: i32) -> (i32, i32, i32) {
    %c0_i32 = arith.constant 0 : i32
    %c0_i32_0 = arith.constant 0 : i32
    %c0_i32_1 = arith.constant 0 : i32
    return %c0_i32, %arg0, %c0_i32_0 : i32, i32, i32
  }
  func.func @transform_1(%arg0: i32) -> (i32, i32) {
    %c0_i32 = arith.constant 0 : i32
    %c0_i32_0 = arith.constant 0 : i32
    %c0_i32_1 = arith.constant 0 : i32
    return %c0_i32, %c0_i32_0 : i32, i32
  }
  func.func @transform_2(%arg0: i32) -> (i32, i32) {
    %c0_i32 = arith.constant 0 : i32
    %c0_i32_0 = arith.constant 0 : i32
    %c0_i32_1 = arith.constant 0 : i32
    return %c0_i32, %c0_i32_0 : i32, i32
  }
  func.func @transform_3(%arg0: i32) -> (i32, i32) {
    %c0_i32 = arith.constant 0 : i32
    %c0_i32_0 = arith.constant 0 : i32
    return %arg0, %c0_i32 : i32, i32
  }
}

</mosaic_0001>

<llo_original>
// kernel: tpu_custom_call.1
$region0: #{tpu_custom_call.1}
  #allocation0 [shape = 'u32[]', space=smem, size = 0x4, offset = 0x4, fixed_abs, tag = 'smem constant byte address 0x4 - core index']
  #allocation1 [shape = 'u32[144,128]{1,0:T(1,128)}', space=vmem, size = 0x12000, scoped, tag = 'internal scratch']
  %s0 = inlined_call_operand.hbm [shape: bf16[4,8,1152], index: 0, kind: input, shape index: {}]
  %s1 = inlined_call_operand.hbm [shape: bf16[1152,256], index: 1, kind: input, shape index: {}]
  %s2 = inlined_call_operand.vmem [shape: f32[1,256], index: 2, kind: input, shape index: {}]
  %s3 = inlined_call_operand.hbm [shape: f32[8,256], index: 3, kind: output, shape index: {}]
  %s4 = sld [smem:[#allocation0]]
  $region30: #{tpu_custom_call.1} parent=0
    _
  %s6 = ssub.s32 1, %s4
  %s7 = scalar_select 0, %s6, %s4
  $region1: #{tpu_custom_call.1} parent=0
    #allocation2 [shape = 'u8[73728]{0}', space=vmem, size = 0x12000, scoped, tag = 'input window, operand 0, single buffered']
    #allocation3 [shape = 's32[1]{0}', space=sflag, size = 0x4, scoped, tag = 'scoped memory for tpu_custom_call.1']
    #allocation4 [shape = 's32[1]{0}', space=sflag, size = 0x4, scoped, tag = 'scoped memory for tpu_custom_call.1']
    #allocation5 [shape = 'u8[589824]{0}', space=vmem, size = 0x90000, scoped, tag = 'input window, operand 1, single buffered']
    #allocation6 [shape = 's32[1]{0}', space=sflag, size = 0x4, scoped, tag = 'scoped memory for tpu_custom_call.1']
    #allocation7 [shape = 'u8[8192]{0}', space=vmem, size = 0x2000, scoped, tag = 'output window, operand 0, single buffered']
    %8 = vsyncpa [#allocation3], 0
    %9 = vsyncpa [#allocation6], 0
    %10 = vsyncpa [#allocation4], 0
    // Predicated region
    $region2: #{tpu_custom_call.1} parent=1 // pred_check
      _
    $region3: #{tpu_custom_call.1} parent=1 // pred_check_branch
      %12 = sbr.rel (0) target = $region5
    $region4: #{tpu_custom_call.1} parent=1 // pred_region
      %s14 = ssub.s32 2304, 2304
      %15 = vsyncadd [#allocation3], %s14
      %s16 = sshll.u32 [#allocation2], 4
      %s17 = int_to_ptr.vmem [resolvable:$true] %s16
      %22 = dma.hbm_to_vmem [thread:$0]  %s0, 2304, %s17, [#allocation3], 576, 576, 36
    $region5: #{tpu_custom_call.1} parent=1 // pred_fallthru
      _
    // Predicated region
    $region6: #{tpu_custom_call.1} parent=1 // pred_check
      _
    $region7: #{tpu_custom_call.1} parent=1 // pred_check_branch
      %24 = sbr.rel (0) target = $region9
    $region8: #{tpu_custom_call.1} parent=1 // pred_region
      %s26 = ssub.s32 18432, 18432
      %27 = vsyncadd [#allocation6], %s26
      %s28 = sshll.u32 [#allocation5], 4
      %s29 = int_to_ptr.vmem [resolvable:$true] %s28
      %34 = dma.hbm_to_vmem [thread:$0]  %s1, 18432, %s29, [#allocation6], 128, 128, 8
    $region9: #{tpu_custom_call.1} parent=1 // pred_fallthru
      _
    // Predicated region
    $region10: #{tpu_custom_call.1} parent=1 // pred_check
      _
    $region11: #{tpu_custom_call.1} parent=1 // pred_check_branch
      %36 = sbr.rel (0) target = $region13
    $region12: #{tpu_custom_call.1} parent=1 // pred_region
      _
    $region13: #{tpu_custom_call.1} parent=1 // pred_fallthru
      _
    // Predicated region
    $region14: #{tpu_custom_call.1} parent=1 // pred_check
      _
    $region15: #{tpu_custom_call.1} parent=1 // pred_check_branch
      %38 = sbr.rel (0) target = $region17
    $region16: #{tpu_custom_call.1} parent=1 // pred_region
      %39 = dma.done [#allocation3], 2304
    $region17: #{tpu_custom_call.1} parent=1 // pred_fallthru
      _
    // Predicated region
    $region18: #{tpu_custom_call.1} parent=1 // pred_check
      _
    $region19: #{tpu_custom_call.1} parent=1 // pred_check_branch
      %41 = sbr.rel (0) target = $region21
    $region20: #{tpu_custom_call.1} parent=1 // pred_region
      %42 = dma.done [#allocation6], 18432
    $region21: #{tpu_custom_call.1} parent=1 // pred_fallthru
      _
    %v44 = vld [vmem:[#allocation5] sm:$0xff]
    %v45 = vld [vmem:[#allocation5 + $0x8] sm:$0xff]
    %v46 = vld [vmem:[#allocation5 + $0x10] sm:$0xff]
    %v47 = vld [vmem:[#allocation5 + $0x18] sm:$0xff]
    %v48 = vld [vmem:[#allocation5 + $0x20] sm:$0xff]
    %v49 = vld [vmem:[#allocation5 + $0x28] sm:$0xff]
    %v50 = vld [vmem:[#allocation5 + $0x30] sm:$0xff]
    %v51 = vld [vmem:[#allocation5 + $0x38] sm:$0xff]
    %v52 = vld [vmem:[#allocation5 + $0x40] sm:$0xff]
    %v53 = vld [vmem:[#allocation5 + $0x48] sm:$0xff]
    %v54 = vld [vmem:[#allocation5 + $0x50] sm:$0xff]
    %v55 = vld [vmem:[#allocation5 + $0x58] sm:$0xff]
    %v56 = vld [vmem:[#allocation5 + $0x60] sm:$0xff]
    %v57 = vld [vmem:[#allocation5 + $0x68] sm:$0xff]
    %v58 = vld [vmem:[#allocation5 + $0x70] sm:$0xff]
    %v59 = vld [vmem:[#allocation5 + $0x78] sm:$0xff]
    %v60 = vld [vmem:[#allocation5 + $0x80] sm:$0xff]
    %v61 = vld [vmem:[#allocation5 + $0x88] sm:$0xff]
    %v62 = vld [vmem:[#allocation5 + $0x90] sm:$0xff]
    %v63 = vld [vmem:[#allocation5 + $0x98] sm:$0xff]
    %v64 = vld [vmem:[#allocation5 + $0xa0] sm:$0xff]
    %v65 = vld [vmem:[#allocation5 + $0xa8] sm:$0xff]
    %v66 = vld [vmem:[#allocation5 + $0xb0] sm:$0xff]
    %v67 = vld [vmem:[#allocation5 + $0xb8] sm:$0xff]
    %v68 = vld [vmem:[#allocation5 + $0xc0] sm:$0xff]
    %v69 = vld [vmem:[#allocation5 + $0xc8] sm:$0xff]
    %v70 = vld [vmem:[#allocation5 + $0xd0] sm:$0xff]
    %v71 = vld [vmem:[#allocation5 + $0xd8] sm:$0xff]
    %v72 = vld [vmem:[#allocation5 + $0xe0] sm:$0xff]
    %v73 = vld [vmem:[#allocation5 + $0xe8] sm:$0xff]
    %v74 = vld [vmem:[#allocation5 + $0xf0] sm:$0xff]
    %v75 = vld [vmem:[#allocation5 + $0xf8] sm:$0xff]
    %v76 = vld [vmem:[#allocation5 + $0x100] sm:$0xff]
    %v77 = vld [vmem:[#allocation5 + $0x108] sm:$0xff]
    %v78 = vld [vmem:[#allocation5 + $0x110] sm:$0xff]
    %v79 = vld [vmem:[#allocation5 + $0x118] sm:$0xff]
    %v80 = vld [vmem:[#allocation5 + $0x120] sm:$0xff]
    %v81 = vld [vmem:[#allocation5 + $0x128] sm:$0xff]
    %v82 = vld [vmem:[#allocation5 + $0x130] sm:$0xff]
    %v83 = vld [vmem:[#allocation5 + $0x138] sm:$0xff]
    %v84 = vld [vmem:[#allocation5 + $0x140] sm:$0xff]
    %v85 = vld [vmem:[#allocation5 + $0x148] sm:$0xff]
    %v86 = vld [vmem:[#allocation5 + $0x150] sm:$0xff]
    %v87 = vld [vmem:[#allocation5 + $0x158] sm:$0xff]
    %v88 = vld [vmem:[#allocation5 + $0x160] sm:$0xff]
    %v89 = vld [vmem:[#allocation5 + $0x168] sm:$0xff]
    %v90 = vld [vmem:[#allocation5 + $0x170] sm:$0xff]
    %v91 = vld [vmem:[#allocation5 + $0x178] sm:$0xff]
    %v92 = vld [vmem:[#allocation5 + $0x180] sm:$0xff]
    %v93 = vld [vmem:[#allocation5 + $0x188] sm:$0xff]
    %v94 = vld [vmem:[#allocation5 + $0x190] sm:$0xff]
    %v95 = vld [vmem:[#allocation5 + $0x198] sm:$0xff]
    %v96 = vld [vmem:[#allocation5 + $0x1a0] sm:$0xff]
    %v97 = vld [vmem:[#allocation5 + $0x1a8] sm:$0xff]
    %v98 = vld [vmem:[#allocation5 + $0x1b0] sm:$0xff]
    %v99 = vld [vmem:[#allocation5 + $0x1b8] sm:$0xff]
    %v100 = vld [vmem:[#allocation5 + $0x1c0] sm:$0xff]
    %v101 = vld [vmem:[#allocation5 + $0x1c8] sm:$0xff]
    %v102 = vld [vmem:[#allocation5 + $0x1d0] sm:$0xff]
    %v103 = vld [vmem:[#allocation5 + $0x1d8] sm:$0xff]
    %v104 = vld [vmem:[#allocation5 + $0x1e0] sm:$0xff]
    %v105 = vld [vmem:[#allocation5 + $0x1e8] sm:$0xff]
    %v106 = vld [vmem:[#allocation5 + $0x1f0] sm:$0xff]
    %v107 = vld [vmem:[#allocation5 + $0x1f8] sm:$0xff]
    %v108 = vld [vmem:[#allocation5 + $0x200] sm:$0xff]
    %v109 = vld [vmem:[#allocation5 + $0x208] sm:$0xff]
    %v110 = vld [vmem:[#allocation5 + $0x210] sm:$0xff]
    %v111 = vld [vmem:[#allocation5 + $0x218] sm:$0xff]
    %v112 = vld [vmem:[#allocation5 + $0x220] sm:$0xff]
    %v113 = vld [vmem:[#allocation5 + $0x228] sm:$0xff]
    %v114 = vld [vmem:[#allocation5 + $0x230] sm:$0xff]
    %v115 = vld [vmem:[#allocation5 + $0x238] sm:$0xff]
    %v116 = vld [vmem:[#allocation5 + $0x240] sm:$0xff]
    %v117 = vld [vmem:[#allocation5 + $0x248] sm:$0xff]
    %v118 = vld [vmem:[#allocation5 + $0x250] sm:$0xff]
    %v119 = vld [vmem:[#allocation5 + $0x258] sm:$0xff]
    %v120 = vld [vmem:[#allocation5 + $0x260] sm:$0xff]
    %v121 = vld [vmem:[#allocation5 + $0x268] sm:$0xff]
    %v122 = vld [vmem:[#allocation5 + $0x270] sm:$0xff]
    %v123 = vld [vmem:[#allocation5 + $0x278] sm:$0xff]
    %v124 = vld [vmem:[#allocation5 + $0x280] sm:$0xff]
    %v125 = vld [vmem:[#allocation5 + $0x288] sm:$0xff]
    %v126 = vld [vmem:[#allocation5 + $0x290] sm:$0xff]
    %v127 = vld [vmem:[#allocation5 + $0x298] sm:$0xff]
    %v128 = vld [vmem:[#allocation5 + $0x2a0] sm:$0xff]
    %v129 = vld [vmem:[#allocation5 + $0x2a8] sm:$0xff]
    %v130 = vld [vmem:[#allocation5 + $0x2b0] sm:$0xff]
    %v131 = vld [vmem:[#allocation5 + $0x2b8] sm:$0xff]
    %v132 = vld [vmem:[#allocation5 + $0x2c0] sm:$0xff]
    %v133 = vld [vmem:[#allocation5 + $0x2c8] sm:$0xff]
    %v134 = vld [vmem:[#allocation5 + $0x2d0] sm:$0xff]
    %v135 = vld [vmem:[#allocation5 + $0x2d8] sm:$0xff]
    %v136 = vld [vmem:[#allocation5 + $0x2e0] sm:$0xff]
    %v137 = vld [vmem:[#allocation5 + $0x2e8] sm:$0xff]
    %v138 = vld [vmem:[#allocation5 + $0x2f0] sm:$0xff]
    %v139 = vld [vmem:[#allocation5 + $0x2f8] sm:$0xff]
    %v140 = vld [vmem:[#allocation5 + $0x300] sm:$0xff]
    %v141 = vld [vmem:[#allocation5 + $0x308] sm:$0xff]
    %v142 = vld [vmem:[#allocation5 + $0x310] sm:$0xff]
    %v143 = vld [vmem:[#allocation5 + $0x318] sm:$0xff]
    %v144 = vld [vmem:[#allocation5 + $0x320] sm:$0xff]
    %v145 = vld [vmem:[#allocation5 + $0x328] sm:$0xff]
    %v146 = vld [vmem:[#allocation5 + $0x330] sm:$0xff]
    %v147 = vld [vmem:[#allocation5 + $0x338] sm:$0xff]
    %v148 = vld [vmem:[#allocation5 + $0x340] sm:$0xff]
    %v149 = vld [vmem:[#allocation5 + $0x348] sm:$0xff]
    %v150 = vld [vmem:[#allocation5 + $0x350] sm:$0xff]
    %v151 = vld [vmem:[#allocation5 + $0x358] sm:$0xff]
    %v152 = vld [vmem:[#allocation5 + $0x360] sm:$0xff]
    %v153 = vld [vmem:[#allocation5 + $0x368] sm:$0xff]
    %v154 = vld [vmem:[#allocation5 + $0x370] sm:$0xff]
    %v155 = vld [vmem:[#allocation5 + $0x378] sm:$0xff]
    %v156 = vld [vmem:[#allocation5 + $0x380] sm:$0xff]
    %v157 = vld [vmem:[#allocation5 + $0x388] sm:$0xff]
    %v158 = vld [vmem:[#allocation5 + $0x390] sm:$0xff]
    %v159 = vld [vmem:[#allocation5 + $0x398] sm:$0xff]
    %v160 = vld [vmem:[#allocation5 + $0x3a0] sm:$0xff]
    %v161 = vld [vmem:[#allocation5 + $0x3a8] sm:$0xff]
    %v162 = vld [vmem:[#allocation5 + $0x3b0] sm:$0xff]
    %v163 = vld [vmem:[#allocation5 + $0x3b8] sm:$0xff]
    %v164 = vld [vmem:[#allocation5 + $0x3c0] sm:$0xff]
    %v165 = vld [vmem:[#allocation5 + $0x3c8] sm:$0xff]
    %v166 = vld [vmem:[#allocation5 + $0x3d0] sm:$0xff]
    %v167 = vld [vmem:[#allocation5 + $0x3d8] sm:$0xff]
    %v168 = vld [vmem:[#allocation5 + $0x3e0] sm:$0xff]
    %v169 = vld [vmem:[#allocation5 + $0x3e8] sm:$0xff]
    %v170 = vld [vmem:[#allocation5 + $0x3f0] sm:$0xff]
    %v171 = vld [vmem:[#allocation5 + $0x3f8] sm:$0xff]
    %v172 = vld [vmem:[#allocation5 + $0x400] sm:$0xff]
    %v173 = vld [vmem:[#allocation5 + $0x408] sm:$0xff]
    %v174 = vld [vmem:[#allocation5 + $0x410] sm:$0xff]
    %v175 = vld [vmem:[#allocation5 + $0x418] sm:$0xff]
    %v176 = vld [vmem:[#allocation5 + $0x420] sm:$0xff]
    %v177 = vld [vmem:[#allocation5 + $0x428] sm:$0xff]
    %v178 = vld [vmem:[#allocation5 + $0x430] sm:$0xff]
    %v179 = vld [vmem:[#allocation5 + $0x438] sm:$0xff]
    %v180 = vld [vmem:[#allocation5 + $0x440] sm:$0xff]
    %v181 = vld [vmem:[#allocation5 + $0x448] sm:$0xff]
    %v182 = vld [vmem:[#allocation5 + $0x450] sm:$0xff]
    %v183 = vld [vmem:[#allocation5 + $0x458] sm:$0xff]
    %v184 = vld [vmem:[#allocation5 + $0x460] sm:$0xff]
    %v185 = vld [vmem:[#allocation5 + $0x468] sm:$0xff]
    %v186 = vld [vmem:[#allocation5 + $0x470] sm:$0xff]
    %v187 = vld [vmem:[#allocation5 + $0x478] sm:$0xff]
    %v188 = vld [vmem:[#allocation2] sm:$0xff]
    %v189 = vld [vmem:[#allocation2 + $0x8] sm:$0xff]
    %v190 = vld [vmem:[#allocation2 + $0x10] sm:$0xff]
    %v191 = vld [vmem:[#allocation2 + $0x18] sm:$0xff]
    %v192 = vld [vmem:[#allocation2 + $0x20] sm:$0xf]
    %v198 = vunpack.c.l.b16 %v188
    %v199 = vunpack.c.h.b16 %v188
    %v200 = vunpack.c.l.b16 %v189
    %v201 = vunpack.c.h.b16 %v189
    %v202 = vunpack.c.l.b16 %v190
    %v203 = vunpack.c.h.b16 %v190
    %v204 = vunpack.c.l.b16 %v191
    %v205 = vunpack.c.h.b16 %v191
    %v206 = vunpack.c.l.b16 %v192
    %v207 = vpack.c.b16 %v198, %v198
    %v208 = vpack.c.b16 %v199, %v199
    %v209 = vpack.c.b16 %v200, %v200
    %v210 = vpack.c.b16 %v201, %v201
    %v211 = vpack.c.b16 %v202, %v202
    %v212 = vpack.c.b16 %v203, %v203
    %v213 = vpack.c.b16 %v204, %v204
    %v214 = vpack.c.b16 %v205, %v205
    %v215 = vpack.c.b16 %v206, %v206
    %v369 = vunpack.c.l.b16 %v44
    %v370 = vunpack.c.h.b16 %v44
    %v371 = vunpack.c.l.b16 %v45
    %v372 = vunpack.c.h.b16 %v45
    %v373 = vunpack.c.l.b16 %v46
    %v374 = vunpack.c.h.b16 %v46
    %v375 = vunpack.c.l.b16 %v47
    %v376 = vunpack.c.h.b16 %v47
    %v377 = vunpack.c.l.b16 %v48
    %v378 = vunpack.c.h.b16 %v48
    %v379 = vunpack.c.l.b16 %v49
    %v380 = vunpack.c.h.b16 %v49
    %v381 = vunpack.c.l.b16 %v50
    %v382 = vunpack.c.h.b16 %v50
    %v383 = vunpack.c.l.b16 %v51
    %v384 = vunpack.c.h.b16 %v51
    %v385 = vunpack.c.l.b16 %v52
    %v386 = vunpack.c.h.b16 %v52
    %v387 = vunpack.c.l.b16 %v53
    %v388 = vunpack.c.h.b16 %v53
    %v389 = vunpack.c.l.b16 %v54
    %v390 = vunpack.c.h.b16 %v54
    %v391 = vunpack.c.l.b16 %v55
    %v392 = vunpack.c.h.b16 %v55
    %v393 = vunpack.c.l.b16 %v56
    %v394 = vunpack.c.h.b16 %v56
    %v395 = vunpack.c.l.b16 %v57
    %v396 = vunpack.c.h.b16 %v57
    %v397 = vunpack.c.l.b16 %v58
    %v398 = vunpack.c.h.b16 %v58
    %v399 = vunpack.c.l.b16 %v59
    %v400 = vunpack.c.h.b16 %v59
    %v401 = vunpack.c.l.b16 %v60
    %v402 = vunpack.c.h.b16 %v60
    %v403 = vunpack.c.l.b16 %v61
    %v404 = vunpack.c.h.b16 %v61
    %v405 = vunpack.c.l.b16 %v62
    %v406 = vunpack.c.h.b16 %v62
    %v407 = vunpack.c.l.b16 %v63
    %v408 = vunpack.c.h.b16 %v63
    %v409 = vunpack.c.l.b16 %v64
    %v410 = vunpack.c.h.b16 %v64
    %v411 = vunpack.c.l.b16 %v65
    %v412 = vunpack.c.h.b16 %v65
    %v413 = vunpack.c.l.b16 %v66
    %v414 = vunpack.c.h.b16 %v66
    %v415 = vunpack.c.l.b16 %v67
    %v416 = vunpack.c.h.b16 %v67
    %v417 = vunpack.c.l.b16 %v68
    %v418 = vunpack.c.h.b16 %v68
    %v419 = vunpack.c.l.b16 %v69
    %v420 = vunpack.c.h.b16 %v69
    %v421 = vunpack.c.l.b16 %v70
    %v422 = vunpack.c.h.b16 %v70
    %v423 = vunpack.c.l.b16 %v71
    %v424 = vunpack.c.h.b16 %v71
    %v425 = vunpack.c.l.b16 %v72
    %v426 = vunpack.c.h.b16 %v72
    %v427 = vunpack.c.l.b16 %v73
    %v428 = vunpack.c.h.b16 %v73
    %v429 = vunpack.c.l.b16 %v74
    %v430 = vunpack.c.h.b16 %v74
    %v431 = vunpack.c.l.b16 %v75
    %v432 = vunpack.c.h.b16 %v75
    %v433 = vunpack.c.l.b16 %v76
    %v434 = vunpack.c.h.b16 %v76
    %v435 = vunpack.c.l.b16 %v77
    %v436 = vunpack.c.h.b16 %v77
    %v437 = vunpack.c.l.b16 %v78
    %v438 = vunpack.c.h.b16 %v78
    %v439 = vunpack.c.l.b16 %v79
    %v440 = vunpack.c.h.b16 %v79
    %v441 = vunpack.c.l.b16 %v80
    %v442 = vunpack.c.h.b16 %v80
    %v443 = vunpack.c.l.b16 %v81
    %v444 = vunpack.c.h.b16 %v81
    %v445 = vunpack.c.l.b16 %v82
    %v446 = vunpack.c.h.b16 %v82
    %v447 = vunpack.c.l.b16 %v83
    %v448 = vunpack.c.h.b16 %v83
    %v449 = vunpack.c.l.b16 %v84
    %v450 = vunpack.c.h.b16 %v84
    %v451 = vunpack.c.l.b16 %v85
    %v452 = vunpack.c.h.b16 %v85
    %v453 = vunpack.c.l.b16 %v86
    %v454 = vunpack.c.h.b16 %v86
    %v455 = vunpack.c.l.b16 %v87
    %v456 = vunpack.c.h.b16 %v87
    %v457 = vunpack.c.l.b16 %v88
    %v458 = vunpack.c.h.b16 %v88
    %v459 = vunpack.c.l.b16 %v89
    %v460 = vunpack.c.h.b16 %v89
    %v461 = vunpack.c.l.b16 %v90
    %v462 = vunpack.c.h.b16 %v90
    %v463 = vunpack.c.l.b16 %v91
    %v464 = vunpack.c.h.b16 %v91
    %v465 = vunpack.c.l.b16 %v92
    %v466 = vunpack.c.h.b16 %v92
    %v467 = vunpack.c.l.b16 %v93
    %v468 = vunpack.c.h.b16 %v93
    %v469 = vunpack.c.l.b16 %v94
    %v470 = vunpack.c.h.b16 %v94
    %v471 = vunpack.c.l.b16 %v95
    %v472 = vunpack.c.h.b16 %v95
    %v473 = vunpack.c.l.b16 %v96
    %v474 = vunpack.c.h.b16 %v96
    %v475 = vunpack.c.l.b16 %v97
    %v476 = vunpack.c.h.b16 %v97
    %v477 = vunpack.c.l.b16 %v98
    %v478 = vunpack.c.h.b16 %v98
    %v479 = vunpack.c.l.b16 %v99
    %v480 = vunpack.c.h.b16 %v99
    %v481 = vunpack.c.l.b16 %v100
    %v482 = vunpack.c.h.b16 %v100
    %v483 = vunpack.c.l.b16 %v101
    %v484 = vunpack.c.h.b16 %v101
    %v485 = vunpack.c.l.b16 %v102
    %v486 = vunpack.c.h.b16 %v102
    %v487 = vunpack.c.l.b16 %v103
    %v488 = vunpack.c.h.b16 %v103
    %v489 = vunpack.c.l.b16 %v104
    %v490 = vunpack.c.h.b16 %v104
    %v491 = vunpack.c.l.b16 %v105
    %v492 = vunpack.c.h.b16 %v105
    %v493 = vunpack.c.l.b16 %v106
    %v494 = vunpack.c.h.b16 %v106
    %v495 = vunpack.c.l.b16 %v107
    %v496 = vunpack.c.h.b16 %v107
    %v497 = vunpack.c.l.b16 %v108
    %v498 = vunpack.c.h.b16 %v108
    %v499 = vunpack.c.l.b16 %v109
    %v500 = vunpack.c.h.b16 %v109
    %v501 = vunpack.c.l.b16 %v110
    %v502 = vunpack.c.h.b16 %v110
    %v503 = vunpack.c.l.b16 %v111
    %v504 = vunpack.c.h.b16 %v111
    %v505 = vunpack.c.l.b16 %v112
    %v506 = vunpack.c.h.b16 %v112
    %v507 = vunpack.c.l.b16 %v113
    %v508 = vunpack.c.h.b16 %v113
    %v509 = vunpack.c.l.b16 %v114
    %v510 = vunpack.c.h.b16 %v114
    %v511 = vunpack.c.l.b16 %v115
    %v512 = vunpack.c.h.b16 %v115
    %v513 = vunpack.c.l.b16 %v116
    %v514 = vunpack.c.h.b16 %v116
    %v515 = vunpack.c.l.b16 %v117
    %v516 = vunpack.c.h.b16 %v117
    %v517 = vunpack.c.l.b16 %v118
    %v518 = vunpack.c.h.b16 %v118
    %v519 = vunpack.c.l.b16 %v119
    %v520 = vunpack.c.h.b16 %v119
    %v521 = vunpack.c.l.b16 %v120
    %v522 = vunpack.c.h.b16 %v120
    %v523 = vunpack.c.l.b16 %v121
    %v524 = vunpack.c.h.b16 %v121
    %v525 = vunpack.c.l.b16 %v122
    %v526 = vunpack.c.h.b16 %v122
    %v527 = vunpack.c.l.b16 %v123
    %v528 = vunpack.c.h.b16 %v123
    %v529 = vunpack.c.l.b16 %v124
    %v530 = vunpack.c.h.b16 %v124
    %v531 = vunpack.c.l.b16 %v125
    %v532 = vunpack.c.h.b16 %v125
    %v533 = vunpack.c.l.b16 %v126
    %v534 = vunpack.c.h.b16 %v126
    %v535 = vunpack.c.l.b16 %v127
    %v536 = vunpack.c.h.b16 %v127
    %v537 = vunpack.c.l.b16 %v128
    %v538 = vunpack.c.h.b16 %v128
    %v539 = vunpack.c.l.b16 %v129
    %v540 = vunpack.c.h.b16 %v129
    %v541 = vunpack.c.l.b16 %v130
    %v542 = vunpack.c.h.b16 %v130
    %v543 = vunpack.c.l.b16 %v131
    %v544 = vunpack.c.h.b16 %v131
    %v545 = vunpack.c.l.b16 %v132
    %v546 = vunpack.c.h.b16 %v132
    %v547 = vunpack.c.l.b16 %v133
    %v548 = vunpack.c.h.b16 %v133
    %v549 = vunpack.c.l.b16 %v134
    %v550 = vunpack.c.h.b16 %v134
    %v551 = vunpack.c.l.b16 %v135
    %v552 = vunpack.c.h.b16 %v135
    %v553 = vunpack.c.l.b16 %v136
    %v554 = vunpack.c.h.b16 %v136
    %v555 = vunpack.c.l.b16 %v137
    %v556 = vunpack.c.h.b16 %v137
    %v557 = vunpack.c.l.b16 %v138
    %v558 = vunpack.c.h.b16 %v138
    %v559 = vunpack.c.l.b16 %v139
    %v560 = vunpack.c.h.b16 %v139
    %v561 = vunpack.c.l.b16 %v140
    %v562 = vunpack.c.h.b16 %v140
    %v563 = vunpack.c.l.b16 %v141
    %v564 = vunpack.c.h.b16 %v141
    %v565 = vunpack.c.l.b16 %v142
    %v566 = vunpack.c.h.b16 %v142
    %v567 = vunpack.c.l.b16 %v143
    %v568 = vunpack.c.h.b16 %v143
    %v569 = vunpack.c.l.b16 %v144
    %v570 = vunpack.c.h.b16 %v144
    %v571 = vunpack.c.l.b16 %v145
    %v572 = vunpack.c.h.b16 %v145
    %v573 = vunpack.c.l.b16 %v146
    %v574 = vunpack.c.h.b16 %v146
    %v575 = vunpack.c.l.b16 %v147
    %v576 = vunpack.c.h.b16 %v147
    %v577 = vunpack.c.l.b16 %v148
    %v578 = vunpack.c.h.b16 %v148
    %v579 = vunpack.c.l.b16 %v149
    %v580 = vunpack.c.h.b16 %v149
    %v581 = vunpack.c.l.b16 %v150
    %v582 = vunpack.c.h.b16 %v150
    %v583 = vunpack.c.l.b16 %v151
    %v584 = vunpack.c.h.b16 %v151
    %v585 = vunpack.c.l.b16 %v152
    %v586 = vunpack.c.h.b16 %v152
    %v587 = vunpack.c.l.b16 %v153
    %v588 = vunpack.c.h.b16 %v153
    %v589 = vunpack.c.l.b16 %v154
    %v590 = vunpack.c.h.b16 %v154
    %v591 = vunpack.c.l.b16 %v155
    %v592 = vunpack.c.h.b16 %v155
    %v593 = vunpack.c.l.b16 %v156
    %v594 = vunpack.c.h.b16 %v156
    %v595 = vunpack.c.l.b16 %v157
    %v596 = vunpack.c.h.b16 %v157
    %v597 = vunpack.c.l.b16 %v158
    %v598 = vunpack.c.h.b16 %v158
    %v599 = vunpack.c.l.b16 %v159
    %v600 = vunpack.c.h.b16 %v159
    %v601 = vunpack.c.l.b16 %v160
    %v602 = vunpack.c.h.b16 %v160
    %v603 = vunpack.c.l.b16 %v161
    %v604 = vunpack.c.h.b16 %v161
    %v605 = vunpack.c.l.b16 %v162
    %v606 = vunpack.c.h.b16 %v162
    %v607 = vunpack.c.l.b16 %v163
    %v608 = vunpack.c.h.b16 %v163
    %v609 = vunpack.c.l.b16 %v164
    %v610 = vunpack.c.h.b16 %v164
    %v611 = vunpack.c.l.b16 %v165
    %v612 = vunpack.c.h.b16 %v165
    %v613 = vunpack.c.l.b16 %v166
    %v614 = vunpack.c.h.b16 %v166
    %v615 = vunpack.c.l.b16 %v167
    %v616 = vunpack.c.h.b16 %v167
    %v617 = vunpack.c.l.b16 %v168
    %v618 = vunpack.c.h.b16 %v168
    %v619 = vunpack.c.l.b16 %v169
    %v620 = vunpack.c.h.b16 %v169
    %v621 = vunpack.c.l.b16 %v170
    %v622 = vunpack.c.h.b16 %v170
    %v623 = vunpack.c.l.b16 %v171
    %v624 = vunpack.c.h.b16 %v171
    %v625 = vunpack.c.l.b16 %v172
    %v626 = vunpack.c.h.b16 %v172
    %v627 = vunpack.c.l.b16 %v173
    %v628 = vunpack.c.h.b16 %v173
    %v629 = vunpack.c.l.b16 %v174
    %v630 = vunpack.c.h.b16 %v174
    %v631 = vunpack.c.l.b16 %v175
    %v632 = vunpack.c.h.b16 %v175
    %v633 = vunpack.c.l.b16 %v176
    %v634 = vunpack.c.h.b16 %v176
    %v635 = vunpack.c.l.b16 %v177
    %v636 = vunpack.c.h.b16 %v177
    %v637 = vunpack.c.l.b16 %v178
    %v638 = vunpack.c.h.b16 %v178
    %v639 = vunpack.c.l.b16 %v179
    %v640 = vunpack.c.h.b16 %v179
    %v641 = vunpack.c.l.b16 %v180
    %v642 = vunpack.c.h.b16 %v180
    %v643 = vunpack.c.l.b16 %v181
    %v644 = vunpack.c.h.b16 %v181
    %v645 = vunpack.c.l.b16 %v182
    %v646 = vunpack.c.h.b16 %v182
    %v647 = vunpack.c.l.b16 %v183
    %v648 = vunpack.c.h.b16 %v183
    %v649 = vunpack.c.l.b16 %v184
    %v650 = vunpack.c.h.b16 %v184
    %v651 = vunpack.c.l.b16 %v185
    %v652 = vunpack.c.h.b16 %v185
    %v653 = vunpack.c.l.b16 %v186
    %v654 = vunpack.c.h.b16 %v186
    %v655 = vunpack.c.l.b16 %v187
    %v656 = vunpack.c.h.b16 %v187
    %v657 = vpack.c.b16 %v371, %v369
    %v658 = vpack.c.b16 %v372, %v370
    %v659 = vpack.c.b16 %v375, %v373
    %v660 = vpack.c.b16 %v376, %v374
    %v661 = vpack.c.b16 %v379, %v377
    %v662 = vpack.c.b16 %v380, %v378
    %v663 = vpack.c.b16 %v383, %v381
    %v664 = vpack.c.b16 %v384, %v382
    %v665 = vpack.c.b16 %v387, %v385
    %v666 = vpack.c.b16 %v388, %v386
    %v667 = vpack.c.b16 %v391, %v389
    %v668 = vpack.c.b16 %v392, %v390
    %v669 = vpack.c.b16 %v395, %v393
    %v670 = vpack.c.b16 %v396, %v394
    %v671 = vpack.c.b16 %v399, %v397
    %v672 = vpack.c.b16 %v400, %v398
    %v673 = vpack.c.b16 %v403, %v401
    %v674 = vpack.c.b16 %v404, %v402
    %v675 = vpack.c.b16 %v407, %v405
    %v676 = vpack.c.b16 %v408, %v406
    %v677 = vpack.c.b16 %v411, %v409
    %v678 = vpack.c.b16 %v412, %v410
    %v679 = vpack.c.b16 %v415, %v413
    %v680 = vpack.c.b16 %v416, %v414
    %v681 = vpack.c.b16 %v419, %v417
    %v682 = vpack.c.b16 %v420, %v418
    %v683 = vpack.c.b16 %v423, %v421
    %v684 = vpack.c.b16 %v424, %v422
    %v685 = vpack.c.b16 %v427, %v425
    %v686 = vpack.c.b16 %v428, %v426
    %v687 = vpack.c.b16 %v431, %v429
    %v688 = vpack.c.b16 %v432, %v430
    %v689 = vpack.c.b16 %v435, %v433
    %v690 = vpack.c.b16 %v436, %v434
    %v691 = vpack.c.b16 %v439, %v437
    %v692 = vpack.c.b16 %v440, %v438
    %v693 = vpack.c.b16 %v443, %v441
    %v694 = vpack.c.b16 %v444, %v442
    %v695 = vpack.c.b16 %v447, %v445
    %v696 = vpack.c.b16 %v448, %v446
    %v697 = vpack.c.b16 %v451, %v449
    %v698 = vpack.c.b16 %v452, %v450
    %v699 = vpack.c.b16 %v455, %v453
    %v700 = vpack.c.b16 %v456, %v454
    %v701 = vpack.c.b16 %v459, %v457
    %v702 = vpack.c.b16 %v460, %v458
    %v703 = vpack.c.b16 %v463, %v461
    %v704 = vpack.c.b16 %v464, %v462
    %v705 = vpack.c.b16 %v467, %v465
    %v706 = vpack.c.b16 %v468, %v466
    %v707 = vpack.c.b16 %v471, %v469
    %v708 = vpack.c.b16 %v472, %v470
    %v709 = vpack.c.b16 %v475, %v473
    %v710 = vpack.c.b16 %v476, %v474
    %v711 = vpack.c.b16 %v479, %v477
    %v712 = vpack.c.b16 %v480, %v478
    %v713 = vpack.c.b16 %v483, %v481
    %v714 = vpack.c.b16 %v484, %v482
    %v715 = vpack.c.b16 %v487, %v485
    %v716 = vpack.c.b16 %v488, %v486
    %v717 = vpack.c.b16 %v491, %v489
    %v718 = vpack.c.b16 %v492, %v490
    %v719 = vpack.c.b16 %v495, %v493
    %v720 = vpack.c.b16 %v496, %v494
    %v721 = vpack.c.b16 %v499, %v497
    %v722 = vpack.c.b16 %v500, %v498
    %v723 = vpack.c.b16 %v503, %v501
    %v724 = vpack.c.b16 %v504, %v502
    %v725 = vpack.c.b16 %v507, %v505
    %v726 = vpack.c.b16 %v508, %v506
    %v727 = vpack.c.b16 %v511, %v509
    %v728 = vpack.c.b16 %v512, %v510
    %v729 = vpack.c.b16 %v515, %v513
    %v730 = vpack.c.b16 %v516, %v514
    %v731 = vpack.c.b16 %v519, %v517
    %v732 = vpack.c.b16 %v520, %v518
    %v733 = vpack.c.b16 %v523, %v521
    %v734 = vpack.c.b16 %v524, %v522
    %v735 = vpack.c.b16 %v527, %v525
    %v736 = vpack.c.b16 %v528, %v526
    %v737 = vpack.c.b16 %v531, %v529
    %v738 = vpack.c.b16 %v532, %v530
    %v739 = vpack.c.b16 %v535, %v533
    %v740 = vpack.c.b16 %v536, %v534
    %v741 = vpack.c.b16 %v539, %v537
    %v742 = vpack.c.b16 %v540, %v538
    %v743 = vpack.c.b16 %v543, %v541
    %v744 = vpack.c.b16 %v544, %v542
    %v745 = vpack.c.b16 %v547, %v545
    %v746 = vpack.c.b16 %v548, %v546
    %v747 = vpack.c.b16 %v551, %v549
    %v748 = vpack.c.b16 %v552, %v550
    %v749 = vpack.c.b16 %v555, %v553
    %v750 = vpack.c.b16 %v556, %v554
    %v751 = vpack.c.b16 %v559, %v557
    %v752 = vpack.c.b16 %v560, %v558
    %v753 = vpack.c.b16 %v563, %v561
    %v754 = vpack.c.b16 %v564, %v562
    %v755 = vpack.c.b16 %v567, %v565
    %v756 = vpack.c.b16 %v568, %v566
    %v757 = vpack.c.b16 %v571, %v569
    %v758 = vpack.c.b16 %v572, %v570
    %v759 = vpack.c.b16 %v575, %v573
    %v760 = vpack.c.b16 %v576, %v574
    %v761 = vpack.c.b16 %v579, %v577
    %v762 = vpack.c.b16 %v580, %v578
    %v763 = vpack.c.b16 %v583, %v581
    %v764 = vpack.c.b16 %v584, %v582
    %v765 = vpack.c.b16 %v587, %v585
    %v766 = vpack.c.b16 %v588, %v586
    %v767 = vpack.c.b16 %v591, %v589
    %v768 = vpack.c.b16 %v592, %v590
    %v769 = vpack.c.b16 %v595, %v593
    %v770 = vpack.c.b16 %v596, %v594
    %v771 = vpack.c.b16 %v599, %v597
    %v772 = vpack.c.b16 %v600, %v598
    %v773 = vpack.c.b16 %v603, %v601
    %v774 = vpack.c.b16 %v604, %v602
    %v775 = vpack.c.b16 %v607, %v605
    %v776 = vpack.c.b16 %v608, %v606
    %v777 = vpack.c.b16 %v611, %v609
    %v778 = vpack.c.b16 %v612, %v610
    %v779 = vpack.c.b16 %v615, %v613
    %v780 = vpack.c.b16 %v616, %v614
    %v781 = vpack.c.b16 %v619, %v617
    %v782 = vpack.c.b16 %v620, %v618
    %v783 = vpack.c.b16 %v623, %v621
    %v784 = vpack.c.b16 %v624, %v622
    %v785 = vpack.c.b16 %v627, %v625
    %v786 = vpack.c.b16 %v628, %v626
    %v787 = vpack.c.b16 %v631, %v629
    %v788 = vpack.c.b16 %v632, %v630
    %v789 = vpack.c.b16 %v635, %v633
    %v790 = vpack.c.b16 %v636, %v634
    %v791 = vpack.c.b16 %v639, %v637
    %v792 = vpack.c.b16 %v640, %v638
    %v793 = vpack.c.b16 %v643, %v641
    %v794 = vpack.c.b16 %v644, %v642
    %v795 = vpack.c.b16 %v647, %v645
    %v796 = vpack.c.b16 %v648, %v646
    %v797 = vpack.c.b16 %v651, %v649
    %v798 = vpack.c.b16 %v652, %v650
    %v799 = vpack.c.b16 %v655, %v653
    %v800 = vpack.c.b16 %v656, %v654
    %945 = vmatprep.subr.bf16.mxu0 %v658
    %946 = vmatpush1.bf16.msra.mxu0 %v657
    %947 = vmatprep.subr.bf16.mxu0 %v660
    %948 = vmatpush1.bf16.msra.mxu0 %v659
    %949 = vmatprep.subr.bf16.mxu0 %v662
    %950 = vmatpush1.bf16.msra.mxu0 %v661
    %951 = vmatprep.subr.bf16.mxu0 %v664
    %952 = vmatpush1.bf16.msra.mxu0 %v663
    %953 = vmatprep.subr.bf16.mxu0 %v666
    %954 = vmatpush1.bf16.msra.mxu0 %v665
    %955 = vmatprep.subr.bf16.mxu0 %v668
    %956 = vmatpush1.bf16.msra.mxu0 %v667
    %957 = vmatprep.subr.bf16.mxu0 %v670
    %958 = vmatpush1.bf16.msra.mxu0 %v669
    %959 = vmatprep.subr.bf16.mxu0 %v672
    %960 = vmatpush1.bf16.msra.mxu0 %v671
    %961 = vmatprep.subr.bf16.mxu0 %v674
    %962 = vmatpush1.bf16.msra.mxu0 %v673
    %963 = vmatprep.subr.bf16.mxu0 %v676
    %964 = vmatpush1.bf16.msra.mxu0 %v675
    %965 = vmatprep.subr.bf16.mxu0 %v678
    %966 = vmatpush1.bf16.msra.mxu0 %v677
    %967 = vmatprep.subr.bf16.mxu0 %v680
    %968 = vmatpush1.bf16.msra.mxu0 %v679
    %969 = vmatprep.subr.bf16.mxu0 %v682
    %970 = vmatpush1.bf16.msra.mxu0 %v681
    %971 = vmatprep.subr.bf16.mxu0 %v684
    %972 = vmatpush1.bf16.msra.mxu0 %v683
    %973 = vmatprep.subr.bf16.mxu0 %v686
    %974 = vmatpush1.bf16.msra.mxu0 %v685
    %975 = vmatprep.subr.bf16.mxu0 %v688
    %976 = vmatpush1.bf16.msra.mxu0 %v687
    %977 = vmatprep.mubr.bf16.mxu0 %v208
    %978 = vmatmul.mubr.bf16.gmra.mrb[0].mxu0 %v207
    %v979 = vpop.f32.mrb[0].mxu0
    %v980 = vadd.f32 0.0, %v979
    %v981 = vpop.f32.mrb[0].mxu0
    %v982 = vadd.f32 0.0, %v981
    %v983 = vpop.f32.mrb[0].mxu0
    %v984 = vpop.f32.mrb[0].mxu0
    %985 = vdwg.mxu0
    %986 = vmatprep.subr.bf16.mxu0 %v690
    %987 = vmatpush1.bf16.msra.mxu0 %v689
    %988 = vmatprep.subr.bf16.mxu0 %v692
    %989 = vmatpush1.bf16.msra.mxu0 %v691
    %990 = vmatprep.subr.bf16.mxu0 %v694
    %991 = vmatpush1.bf16.msra.mxu0 %v693
    %992 = vmatprep.subr.bf16.mxu0 %v696
    %993 = vmatpush1.bf16.msra.mxu0 %v695
    %994 = vmatprep.subr.bf16.mxu0 %v698
    %995 = vmatpush1.bf16.msra.mxu0 %v697
    %996 = vmatprep.subr.bf16.mxu0 %v700
    %997 = vmatpush1.bf16.msra.mxu0 %v699
    %998 = vmatprep.subr.bf16.mxu0 %v702
    %999 = vmatpush1.bf16.msra.mxu0 %v701
    %1000 = vmatprep.subr.bf16.mxu0 %v704
    %1001 = vmatpush1.bf16.msra.mxu0 %v703
    %1002 = vmatprep.subr.bf16.mxu0 %v706
    %1003 = vmatpush1.bf16.msra.mxu0 %v705
    %1004 = vmatprep.subr.bf16.mxu0 %v708
    %1005 = vmatpush1.bf16.msra.mxu0 %v707
    %1006 = vmatprep.subr.bf16.mxu0 %v710
    %1007 = vmatpush1.bf16.msra.mxu0 %v709
    %1008 = vmatprep.subr.bf16.mxu0 %v712
    %1009 = vmatpush1.bf16.msra.mxu0 %v711
    %1010 = vmatprep.subr.bf16.mxu0 %v714
    %1011 = vmatpush1.bf16.msra.mxu0 %v713
    %1012 = vmatprep.subr.bf16.mxu0 %v716
    %1013 = vmatpush1.bf16.msra.mxu0 %v715
    %1014 = vmatprep.subr.bf16.mxu0 %v718
    %1015 = vmatpush1.bf16.msra.mxu0 %v717
    %1016 = vmatprep.subr.bf16.mxu0 %v720
    %1017 = vmatpush1.bf16.msra.mxu0 %v719
    %1018 = vmatprep.mubr.bf16.mxu0 %v210
    %1019 = vmatmul.mubr.bf16.gmra.mrb[0].mxu0 %v209
    %v1020 = vpop.f32.mrb[0].mxu0
    %v1021 = vadd.f32 %v980, %v1020
    %v1022 = vpop.f32.mrb[0].mxu0
    %v1023 = vadd.f32 %v982, %v1022
    %v1024 = vpop.f32.mrb[0].mxu0
    %v1025 = vpop.f32.mrb[0].mxu0
    %1026 = vdwg.mxu0
    %1027 = vmatprep.subr.bf16.mxu0 %v722
    %1028 = vmatpush1.bf16.msra.mxu0 %v721
    %1029 = vmatprep.subr.bf16.mxu0 %v724
    %1030 = vmatpush1.bf16.msra.mxu0 %v723
    %1031 = vmatprep.subr.bf16.mxu0 %v726
    %1032 = vmatpush1.bf16.msra.mxu0 %v725
    %1033 = vmatprep.subr.bf16.mxu0 %v728
    %1034 = vmatpush1.bf16.msra.mxu0 %v727
    %1035 = vmatprep.subr.bf16.mxu0 %v730
    %1036 = vmatpush1.bf16.msra.mxu0 %v729
    %1037 = vmatprep.subr.bf16.mxu0 %v732
    %1038 = vmatpush1.bf16.msra.mxu0 %v731
    %1039 = vmatprep.subr.bf16.mxu0 %v734
    %1040 = vmatpush1.bf16.msra.mxu0 %v733
    %1041 = vmatprep.subr.bf16.mxu0 %v736
    %1042 = vmatpush1.bf16.msra.mxu0 %v735
    %1043 = vmatprep.subr.bf16.mxu0 %v738
    %1044 = vmatpush1.bf16.msra.mxu0 %v737
    %1045 = vmatprep.subr.bf16.mxu0 %v740
    %1046 = vmatpush1.bf16.msra.mxu0 %v739
    %1047 = vmatprep.subr.bf16.mxu0 %v742
    %1048 = vmatpush1.bf16.msra.mxu0 %v741
    %1049 = vmatprep.subr.bf16.mxu0 %v744
    %1050 = vmatpush1.bf16.msra.mxu0 %v743
    %1051 = vmatprep.subr.bf16.mxu0 %v746
    %1052 = vmatpush1.bf16.msra.mxu0 %v745
    %1053 = vmatprep.subr.bf16.mxu0 %v748
    %1054 = vmatpush1.bf16.msra.mxu0 %v747
    %1055 = vmatprep.subr.bf16.mxu0 %v750
    %1056 = vmatpush1.bf16.msra.mxu0 %v749
    %1057 = vmatprep.subr.bf16.mxu0 %v752
    %1058 = vmatpush1.bf16.msra.mxu0 %v751
    %1059 = vmatprep.mubr.bf16.mxu0 %v212
    %1060 = vmatmul.mubr.bf16.gmra.mrb[0].mxu0 %v211
    %v1061 = vpop.f32.mrb[0].mxu0
    %v1062 = vadd.f32 %v1021, %v1061
    %v1063 = vpop.f32.mrb[0].mxu0
    %v1064 = vadd.f32 %v1023, %v1063
    %v1065 = vpop.f32.mrb[0].mxu0
    %v1066 = vpop.f32.mrb[0].mxu0
    %1067 = vdwg.mxu0
    %1068 = vmatprep.subr.bf16.mxu0 %v754
    %1069 = vmatpush1.bf16.msra.mxu0 %v753
    %1070 = vmatprep.subr.bf16.mxu0 %v756
    %1071 = vmatpush1.bf16.msra.mxu0 %v755
    %1072 = vmatprep.subr.bf16.mxu0 %v758
    %1073 = vmatpush1.bf16.msra.mxu0 %v757
    %1074 = vmatprep.subr.bf16.mxu0 %v760
    %1075 = vmatpush1.bf16.msra.mxu0 %v759
    %1076 = vmatprep.subr.bf16.mxu0 %v762
    %1077 = vmatpush1.bf16.msra.mxu0 %v761
    %1078 = vmatprep.subr.bf16.mxu0 %v764
    %1079 = vmatpush1.bf16.msra.mxu0 %v763
    %1080 = vmatprep.subr.bf16.mxu0 %v766
    %1081 = vmatpush1.bf16.msra.mxu0 %v765
    %1082 = vmatprep.subr.bf16.mxu0 %v768
    %1083 = vmatpush1.bf16.msra.mxu0 %v767
    %1084 = vmatprep.subr.bf16.mxu0 %v770
    %1085 = vmatpush1.bf16.msra.mxu0 %v769
    %1086 = vmatprep.subr.bf16.mxu0 %v772
    %1087 = vmatpush1.bf16.msra.mxu0 %v771
    %1088 = vmatprep.subr.bf16.mxu0 %v774
    %1089 = vmatpush1.bf16.msra.mxu0 %v773
    %1090 = vmatprep.subr.bf16.mxu0 %v776
    %1091 = vmatpush1.bf16.msra.mxu0 %v775
    %1092 = vmatprep.subr.bf16.mxu0 %v778
    %1093 = vmatpush1.bf16.msra.mxu0 %v777
    %1094 = vmatprep.subr.bf16.mxu0 %v780
    %1095 = vmatpush1.bf16.msra.mxu0 %v779
    %1096 = vmatprep.subr.bf16.mxu0 %v782
    %1097 = vmatpush1.bf16.msra.mxu0 %v781
    %1098 = vmatprep.subr.bf16.mxu0 %v784
    %1099 = vmatpush1.bf16.msra.mxu0 %v783
    %1100 = vmatprep.mubr.bf16.mxu0 %v214
    %1101 = vmatmul.mubr.bf16.gmra.mrb[0].mxu0 %v213
    %v1102 = vpop.f32.mrb[0].mxu0
    %v1103 = vadd.f32 %v1062, %v1102
    %v1104 = vpop.f32.mrb[0].mxu0
    %v1105 = vadd.f32 %v1064, %v1104
    %v1106 = vpop.f32.mrb[0].mxu0
    %v1107 = vpop.f32.mrb[0].mxu0
    %1108 = vdwg.mxu0
    %1109 = vmatprep.subr.bf16.mxu0 %v786
    %1110 = vmatpush1.bf16.msra.mxu0 %v785
    %1111 = vmatprep.subr.bf16.mxu0 %v788
    %1112 = vmatpush1.bf16.msra.mxu0 %v787
    %1113 = vmatprep.subr.bf16.mxu0 %v790
    %1114 = vmatpush1.bf16.msra.mxu0 %v789
    %1115 = vmatprep.subr.bf16.mxu0 %v792
    %1116 = vmatpush1.bf16.msra.mxu0 %v791
    %1117 = vmatprep.subr.bf16.mxu0 %v794
    %1118 = vmatpush1.bf16.msra.mxu0 %v793
    %1119 = vmatprep.subr.bf16.mxu0 %v796
    %1120 = vmatpush1.bf16.msra.mxu0 %v795
    %1121 = vmatprep.subr.bf16.mxu0 %v798
    %1122 = vmatpush1.bf16.msra.mxu0 %v797
    %1123 = vmatprep.subr.bf16.mxu0 %v800
    %1124 = vmatpush1.bf16.msra.mxu0 %v799
    %1125 = vmatprep.subr.bf16.mxu0 0
    %1126 = vmatpush1.bf16.msra.mxu0 0
    %1127 = vmatprep.subr.bf16.mxu0 0
    %1128 = vmatpush1.bf16.msra.mxu0 0
    %1129 = vmatprep.subr.bf16.mxu0 0
    %1130 = vmatpush1.bf16.msra.mxu0 0
    %1131 = vmatprep.subr.bf16.mxu0 0
    %1132 = vmatpush1.bf16.msra.mxu0 0
    %1133 = vmatprep.subr.bf16.mxu0 0
    %1134 = vmatpush1.bf16.msra.mxu0 0
    %1135 = vmatprep.subr.bf16.mxu0 0
    %1136 = vmatpush1.bf16.msra.mxu0 0
    %1137 = vmatprep.subr.bf16.mxu0 0
    %1138 = vmatpush1.bf16.msra.mxu0 0
    %1139 = vmatprep.subr.bf16.mxu0 0
    %1140 = vmatpush1.bf16.msra.mxu0 0
    %1141 = vmatprep.mubr.bf16.mxu0 0
    %1142 = vmatmul.mubr.bf16.gmra.mrb[0].mxu0 %v215
    %v1143 = vpop.f32.mrb[0].mxu0
    %v1144 = vadd.f32 %v1103, %v1143
    %v1145 = vpop.f32.mrb[0].mxu0
    %v1146 = vadd.f32 %v1105, %v1145
    %v1147 = vpop.f32.mrb[0].mxu0
    %v1148 = vpop.f32.mrb[0].mxu0
    %1149 = vdwg.mxu0
    %s1150 = scalar_lea.vmem [#allocation2], 36
    %v1151 = vld [vmem:[%s1150] sm:$0xff]
    %v1152 = vld [vmem:[%s1150 + $0x8] sm:$0xff]
    %v1153 = vld [vmem:[%s1150 + $0x10] sm:$0xff]
    %v1154 = vld [vmem:[%s1150 + $0x18] sm:$0xff]
    %v1155 = vld [vmem:[%s1150 + $0x20] sm:$0xf]
    %v1161 = vunpack.c.l.b16 %v1151
    %v1162 = vunpack.c.h.b16 %v1151
    %v1163 = vunpack.c.l.b16 %v1152
    %v1164 = vunpack.c.h.b16 %v1152
    %v1165 = vunpack.c.l.b16 %v1153
    %v1166 = vunpack.c.h.b16 %v1153
    %v1167 = vunpack.c.l.b16 %v1154
    %v1168 = vunpack.c.h.b16 %v1154
    %v1169 = vunpack.c.l.b16 %v1155
    %v1170 = vpack.c.b16 %v1161, %v1161
    %v1171 = vpack.c.b16 %v1162, %v1162
    %v1172 = vpack.c.b16 %v1163, %v1163
    %v1173 = vpack.c.b16 %v1164, %v1164
    %v1174 = vpack.c.b16 %v1165, %v1165
    %v1175 = vpack.c.b16 %v1166, %v1166
    %v1176 = vpack.c.b16 %v1167, %v1167
    %v1177 = vpack.c.b16 %v1168, %v1168
    %v1178 = vpack.c.b16 %v1169, %v1169
    %1188 = vmatprep.subr.bf16.mxu0 %v658
    %1189 = vmatpush1.bf16.msra.mxu0 %v657
    %1190 = vmatprep.subr.bf16.mxu0 %v660
    %1191 = vmatpush1.bf16.msra.mxu0 %v659
    %1192 = vmatprep.subr.bf16.mxu0 %v662
    %1193 = vmatpush1.bf16.msra.mxu0 %v661
    %1194 = vmatprep.subr.bf16.mxu0 %v664
    %1195 = vmatpush1.bf16.msra.mxu0 %v663
    %1196 = vmatprep.subr.bf16.mxu0 %v666
    %1197 = vmatpush1.bf16.msra.mxu0 %v665
    %1198 = vmatprep.subr.bf16.mxu0 %v668
    %1199 = vmatpush1.bf16.msra.mxu0 %v667
    %1200 = vmatprep.subr.bf16.mxu0 %v670
    %1201 = vmatpush1.bf16.msra.mxu0 %v669
    %1202 = vmatprep.subr.bf16.mxu0 %v672
    %1203 = vmatpush1.bf16.msra.mxu0 %v671
    %1204 = vmatprep.subr.bf16.mxu0 %v674
    %1205 = vmatpush1.bf16.msra.mxu0 %v673
    %1206 = vmatprep.subr.bf16.mxu0 %v676
    %1207 = vmatpush1.bf16.msra.mxu0 %v675
    %1208 = vmatprep.subr.bf16.mxu0 %v678
    %1209 = vmatpush1.bf16.msra.mxu0 %v677
    %1210 = vmatprep.subr.bf16.mxu0 %v680
    %1211 = vmatpush1.bf16.msra.mxu0 %v679
    %1212 = vmatprep.subr.bf16.mxu0 %v682
    %1213 = vmatpush1.bf16.msra.mxu0 %v681
    %1214 = vmatprep.subr.bf16.mxu0 %v684
    %1215 = vmatpush1.bf16.msra.mxu0 %v683
    %1216 = vmatprep.subr.bf16.mxu0 %v686
    %1217 = vmatpush1.bf16.msra.mxu0 %v685
    %1218 = vmatprep.subr.bf16.mxu0 %v688
    %1219 = vmatpush1.bf16.msra.mxu0 %v687
    %1220 = vmatprep.mubr.bf16.mxu0 %v1171
    %1221 = vmatmul.mubr.bf16.gmra.mrb[0].mxu0 %v1170
    %v1222 = vpop.f32.mrb[0].mxu0
    %v1223 = vadd.f32 0.0, %v1222
    %v1224 = vpop.f32.mrb[0].mxu0
    %v1225 = vadd.f32 0.0, %v1224
    %v1226 = vpop.f32.mrb[0].mxu0
    %v1227 = vpop.f32.mrb[0].mxu0
    %1228 = vdwg.mxu0
    %1229 = vmatprep.subr.bf16.mxu0 %v690
    %1230 = vmatpush1.bf16.msra.mxu0 %v689
    %1231 = vmatprep.subr.bf16.mxu0 %v692
    %1232 = vmatpush1.bf16.msra.mxu0 %v691
    %1233 = vmatprep.subr.bf16.mxu0 %v694
    %1234 = vmatpush1.bf16.msra.mxu0 %v693
    %1235 = vmatprep.subr.bf16.mxu0 %v696
    %1236 = vmatpush1.bf16.msra.mxu0 %v695
    %1237 = vmatprep.subr.bf16.mxu0 %v698
    %1238 = vmatpush1.bf16.msra.mxu0 %v697
    %1239 = vmatprep.subr.bf16.mxu0 %v700
    %1240 = vmatpush1.bf16.msra.mxu0 %v699
    %1241 = vmatprep.subr.bf16.mxu0 %v702
    %1242 = vmatpush1.bf16.msra.mxu0 %v701
    %1243 = vmatprep.subr.bf16.mxu0 %v704
    %1244 = vmatpush1.bf16.msra.mxu0 %v703
    %1245 = vmatprep.subr.bf16.mxu0 %v706
    %1246 = vmatpush1.bf16.msra.mxu0 %v705
    %1247 = vmatprep.subr.bf16.mxu0 %v708
    %1248 = vmatpush1.bf16.msra.mxu0 %v707
    %1249 = vmatprep.subr.bf16.mxu0 %v710
    %1250 = vmatpush1.bf16.msra.mxu0 %v709
    %1251 = vmatprep.subr.bf16.mxu0 %v712
    %1252 = vmatpush1.bf16.msra.mxu0 %v711
    %1253 = vmatprep.subr.bf16.mxu0 %v714
    %1254 = vmatpush1.bf16.msra.mxu0 %v713
    %1255 = vmatprep.subr.bf16.mxu0 %v716
    %1256 = vmatpush1.bf16.msra.mxu0 %v715
    %1257 = vmatprep.subr.bf16.mxu0 %v718
    %1258 = vmatpush1.bf16.msra.mxu0 %v717
    %1259 = vmatprep.subr.bf16.mxu0 %v720
    %1260 = vmatpush1.bf16.msra.mxu0 %v719
    %1261 = vmatprep.mubr.bf16.mxu0 %v1173
    %1262 = vmatmul.mubr.bf16.gmra.mrb[0].mxu0 %v1172
    %v1263 = vpop.f32.mrb[0].mxu0
    %v1264 = vadd.f32 %v1223, %v1263
    %v1265 = vpop.f32.mrb[0].mxu0
    %v1266 = vadd.f32 %v1225, %v1265
    %v1267 = vpop.f32.mrb[0].mxu0
    %v1268 = vpop.f32.mrb[0].mxu0
    %1269 = vdwg.mxu0
    %1270 = vmatprep.subr.bf16.mxu0 %v722
    %1271 = vmatpush1.bf16.msra.mxu0 %v721
    %1272 = vmatprep.subr.bf16.mxu0 %v724
    %1273 = vmatpush1.bf16.msra.mxu0 %v723
    %1274 = vmatprep.subr.bf16.mxu0 %v726
    %1275 = vmatpush1.bf16.msra.mxu0 %v725
    %1276 = vmatprep.subr.bf16.mxu0 %v728
    %1277 = vmatpush1.bf16.msra.mxu0 %v727
    %1278 = vmatprep.subr.bf16.mxu0 %v730
    %1279 = vmatpush1.bf16.msra.mxu0 %v729
    %1280 = vmatprep.subr.bf16.mxu0 %v732
    %1281 = vmatpush1.bf16.msra.mxu0 %v731
    %1282 = vmatprep.subr.bf16.mxu0 %v734
    %1283 = vmatpush1.bf16.msra.mxu0 %v733
    %1284 = vmatprep.subr.bf16.mxu0 %v736
    %1285 = vmatpush1.bf16.msra.mxu0 %v735
    %1286 = vmatprep.subr.bf16.mxu0 %v738
    %1287 = vmatpush1.bf16.msra.mxu0 %v737
    %1288 = vmatprep.subr.bf16.mxu0 %v740
    %1289 = vmatpush1.bf16.msra.mxu0 %v739
    %1290 = vmatprep.subr.bf16.mxu0 %v742
    %1291 = vmatpush1.bf16.msra.mxu0 %v741
    %1292 = vmatprep.subr.bf16.mxu0 %v744
    %1293 = vmatpush1.bf16.msra.mxu0 %v743
    %1294 = vmatprep.subr.bf16.mxu0 %v746
    %1295 = vmatpush1.bf16.msra.mxu0 %v745
    %1296 = vmatprep.subr.bf16.mxu0 %v748
    %1297 = vmatpush1.bf16.msra.mxu0 %v747
    %1298 = vmatprep.subr.bf16.mxu0 %v750
    %1299 = vmatpush1.bf16.msra.mxu0 %v749
    %1300 = vmatprep.subr.bf16.mxu0 %v752
    %1301 = vmatpush1.bf16.msra.mxu0 %v751
    %1302 = vmatprep.mubr.bf16.mxu0 %v1175
    %1303 = vmatmul.mubr.bf16.gmra.mrb[0].mxu0 %v1174
    %v1304 = vpop.f32.mrb[0].mxu0
    %v1305 = vadd.f32 %v1264, %v1304
    %v1306 = vpop.f32.mrb[0].mxu0
    %v1307 = vadd.f32 %v1266, %v1306
    %v1308 = vpop.f32.mrb[0].mxu0
    %v1309 = vpop.f32.mrb[0].mxu0
    %1310 = vdwg.mxu0
    %1311 = vmatprep.subr.bf16.mxu0 %v754
    %1312 = vmatpush1.bf16.msra.mxu0 %v753
    %1313 = vmatprep.subr.bf16.mxu0 %v756
    %1314 = vmatpush1.bf16.msra.mxu0 %v755
    %1315 = vmatprep.subr.bf16.mxu0 %v758
    %1316 = vmatpush1.bf16.msra.mxu0 %v757
    %1317 = vmatprep.subr.bf16.mxu0 %v760
    %1318 = vmatpush1.bf16.msra.mxu0 %v759
    %1319 = vmatprep.subr.bf16.mxu0 %v762
    %1320 = vmatpush1.bf16.msra.mxu0 %v761
    %1321 = vmatprep.subr.bf16.mxu0 %v764
    %1322 = vmatpush1.bf16.msra.mxu0 %v763
    %1323 = vmatprep.subr.bf16.mxu0 %v766
    %1324 = vmatpush1.bf16.msra.mxu0 %v765
    %1325 = vmatprep.subr.bf16.mxu0 %v768
    %1326 = vmatpush1.bf16.msra.mxu0 %v767
    %1327 = vmatprep.subr.bf16.mxu0 %v770
    %1328 = vmatpush1.bf16.msra.mxu0 %v769
    %1329 = vmatprep.subr.bf16.mxu0 %v772
    %1330 = vmatpush1.bf16.msra.mxu0 %v771
    %1331 = vmatprep.subr.bf16.mxu0 %v774
    %1332 = vmatpush1.bf16.msra.mxu0 %v773
    %1333 = vmatprep.subr.bf16.mxu0 %v776
    %1334 = vmatpush1.bf16.msra.mxu0 %v775
    %1335 = vmatprep.subr.bf16.mxu0 %v778
    %1336 = vmatpush1.bf16.msra.mxu0 %v777
    %1337 = vmatprep.subr.bf16.mxu0 %v780
    %1338 = vmatpush1.bf16.msra.mxu0 %v779
    %1339 = vmatprep.subr.bf16.mxu0 %v782
    %1340 = vmatpush1.bf16.msra.mxu0 %v781
    %1341 = vmatprep.subr.bf16.mxu0 %v784
    %1342 = vmatpush1.bf16.msra.mxu0 %v783
    %1343 = vmatprep.mubr.bf16.mxu0 %v1177
    %1344 = vmatmul.mubr.bf16.gmra.mrb[0].mxu0 %v1176
    %v1345 = vpop.f32.mrb[0].mxu0
    %v1346 = vadd.f32 %v1305, %v1345
    %v1347 = vpop.f32.mrb[0].mxu0
    %v1348 = vadd.f32 %v1307, %v1347
    %v1349 = vpop.f32.mrb[0].mxu0
    %v1350 = vpop.f32.mrb[0].mxu0
    %1351 = vdwg.mxu0
    %1352 = vmatprep.subr.bf16.mxu0 %v786
    %1353 = vmatpush1.bf16.msra.mxu0 %v785
    %1354 = vmatprep.subr.bf16.mxu0 %v788
    %1355 = vmatpush1.bf16.msra.mxu0 %v787
    %1356 = vmatprep.subr.bf16.mxu0 %v790
    %1357 = vmatpush1.bf16.msra.mxu0 %v789
    %1358 = vmatprep.subr.bf16.mxu0 %v792
    %1359 = vmatpush1.bf16.msra.mxu0 %v791
    %1360 = vmatprep.subr.bf16.mxu0 %v794
    %1361 = vmatpush1.bf16.msra.mxu0 %v793
    %1362 = vmatprep.subr.bf16.mxu0 %v796
    %1363 = vmatpush1.bf16.msra.mxu0 %v795
    %1364 = vmatprep.subr.bf16.mxu0 %v798
    %1365 = vmatpush1.bf16.msra.mxu0 %v797
    %1366 = vmatprep.subr.bf16.mxu0 %v800
    %1367 = vmatpush1.bf16.msra.mxu0 %v799
    %1368 = vmatprep.subr.bf16.mxu0 0
    %1369 = vmatpush1.bf16.msra.mxu0 0
    %1370 = vmatprep.subr.bf16.mxu0 0
    %1371 = vmatpush1.bf16.msra.mxu0 0
    %1372 = vmatprep.subr.bf16.mxu0 0
    %1373 = vmatpush1.bf16.msra.mxu0 0
    %1374 = vmatprep.subr.bf16.mxu0 0
    %1375 = vmatpush1.bf16.msra.mxu0 0
    %1376 = vmatprep.subr.bf16.mxu0 0
    %1377 = vmatpush1.bf16.msra.mxu0 0
    %1378 = vmatprep.subr.bf16.mxu0 0
    %1379 = vmatpush1.bf16.msra.mxu0 0
    %1380 = vmatprep.subr.bf16.mxu0 0
    %1381 = vmatpush1.bf16.msra.mxu0 0
    %1382 = vmatprep.subr.bf16.mxu0 0
    %1383 = vmatpush1.bf16.msra.mxu0 0
    %1384 = vmatprep.mubr.bf16.mxu0 0
    %1385 = vmatmul.mubr.bf16.gmra.mrb[0].mxu0 %v1178
    %v1386 = vpop.f32.mrb[0].mxu0
    %v1387 = vadd.f32 %v1346, %v1386
    %v1388 = vpop.f32.mrb[0].mxu0
    %v1389 = vadd.f32 %v1348, %v1388
    %v1390 = vpop.f32.mrb[0].mxu0
    %v1391 = vpop.f32.mrb[0].mxu0
    %1392 = vdwg.mxu0
    %v1393 = vmax.f32 %v1144, %v1387
    %v1394 = vmax.f32 %v1146, %v1389
    %s1395 = scalar_lea.vmem [#allocation2], 72
    %v1396 = vld [vmem:[%s1395] sm:$0xff]
    %v1397 = vld [vmem:[%s1395 + $0x8] sm:$0xff]
    %v1398 = vld [vmem:[%s1395 + $0x10] sm:$0xff]
    %v1399 = vld [vmem:[%s1395 + $0x18] sm:$0xff]
    %v1400 = vld [vmem:[%s1395 + $0x20] sm:$0xf]
    %v1406 = vunpack.c.l.b16 %v1396
    %v1407 = vunpack.c.h.b16 %v1396
    %v1408 = vunpack.c.l.b16 %v1397
    %v1409 = vunpack.c.h.b16 %v1397
    %v1410 = vunpack.c.l.b16 %v1398
    %v1411 = vunpack.c.h.b16 %v1398
    %v1412 = vunpack.c.l.b16 %v1399
    %v1413 = vunpack.c.h.b16 %v1399
    %v1414 = vunpack.c.l.b16 %v1400
    %v1415 = vpack.c.b16 %v1406, %v1406
    %v1416 = vpack.c.b16 %v1407, %v1407
    %v1417 = vpack.c.b16 %v1408, %v1408
    %v1418 = vpack.c.b16 %v1409, %v1409
    %v1419 = vpack.c.b16 %v1410, %v1410
    %v1420 = vpack.c.b16 %v1411, %v1411
    %v1421 = vpack.c.b16 %v1412, %v1412
    %v1422 = vpack.c.b16 %v1413, %v1413
    %v1423 = vpack.c.b16 %v1414, %v1414
    %1433 = vmatprep.subr.bf16.mxu0 %v658
    %1434 = vmatpush1.bf16.msra.mxu0 %v657
    %1435 = vmatprep.subr.bf16.mxu0 %v660
    %1436 = vmatpush1.bf16.msra.mxu0 %v659
    %1437 = vmatprep.subr.bf16.mxu0 %v662
    %1438 = vmatpush1.bf16.msra.mxu0 %v661
    %1439 = vmatprep.subr.bf16.mxu0 %v664
    %1440 = vmatpush1.bf16.msra.mxu0 %v663
    %1441 = vmatprep.subr.bf16.mxu0 %v666
    %1442 = vmatpush1.bf16.msra.mxu0 %v665
    %1443 = vmatprep.subr.bf16.mxu0 %v668
    %1444 = vmatpush1.bf16.msra.mxu0 %v667
    %1445 = vmatprep.subr.bf16.mxu0 %v670
    %1446 = vmatpush1.bf16.msra.mxu0 %v669
    %1447 = vmatprep.subr.bf16.mxu0 %v672
    %1448 = vmatpush1.bf16.msra.mxu0 %v671
    %1449 = vmatprep.subr.bf16.mxu0 %v674
    %1450 = vmatpush1.bf16.msra.mxu0 %v673
    %1451 = vmatprep.subr.bf16.mxu0 %v676
    %1452 = vmatpush1.bf16.msra.mxu0 %v675
    %1453 = vmatprep.subr.bf16.mxu0 %v678
    %1454 = vmatpush1.bf16.msra.mxu0 %v677
    %1455 = vmatprep.subr.bf16.mxu0 %v680
    %1456 = vmatpush1.bf16.msra.mxu0 %v679
    %1457 = vmatprep.subr.bf16.mxu0 %v682
    %1458 = vmatpush1.bf16.msra.mxu0 %v681
    %1459 = vmatprep.subr.bf16.mxu0 %v684
    %1460 = vmatpush1.bf16.msra.mxu0 %v683
    %1461 = vmatprep.subr.bf16.mxu0 %v686
    %1462 = vmatpush1.bf16.msra.mxu0 %v685
    %1463 = vmatprep.subr.bf16.mxu0 %v688
    %1464 = vmatpush1.bf16.msra.mxu0 %v687
    %1465 = vmatprep.mubr.bf16.mxu0 %v1416
    %1466 = vmatmul.mubr.bf16.gmra.mrb[0].mxu0 %v1415
    %v1467 = vpop.f32.mrb[0].mxu0
    %v1468 = vadd.f32 0.0, %v1467
    %v1469 = vpop.f32.mrb[0].mxu0
    %v1470 = vadd.f32 0.0, %v1469
    %v1471 = vpop.f32.mrb[0].mxu0
    %v1472 = vpop.f32.mrb[0].mxu0
    %1473 = vdwg.mxu0
    %1474 = vmatprep.subr.bf16.mxu0 %v690
    %1475 = vmatpush1.bf16.msra.mxu0 %v689
    %1476 = vmatprep.subr.bf16.mxu0 %v692
    %1477 = vmatpush1.bf16.msra.mxu0 %v691
    %1478 = vmatprep.subr.bf16.mxu0 %v694
    %1479 = vmatpush1.bf16.msra.mxu0 %v693
    %1480 = vmatprep.subr.bf16.mxu0 %v696
    %1481 = vmatpush1.bf16.msra.mxu0 %v695
    %1482 = vmatprep.subr.bf16.mxu0 %v698
    %1483 = vmatpush1.bf16.msra.mxu0 %v697
    %1484 = vmatprep.subr.bf16.mxu0 %v700
    %1485 = vmatpush1.bf16.msra.mxu0 %v699
    %1486 = vmatprep.subr.bf16.mxu0 %v702
    %1487 = vmatpush1.bf16.msra.mxu0 %v701
    %1488 = vmatprep.subr.bf16.mxu0 %v704
    %1489 = vmatpush1.bf16.msra.mxu0 %v703
    %1490 = vmatprep.subr.bf16.mxu0 %v706
    %1491 = vmatpush1.bf16.msra.mxu0 %v705
    %1492 = vmatprep.subr.bf16.mxu0 %v708
    %1493 = vmatpush1.bf16.msra.mxu0 %v707
    %1494 = vmatprep.subr.bf16.mxu0 %v710
    %1495 = vmatpush1.bf16.msra.mxu0 %v709
    %1496 = vmatprep.subr.bf16.mxu0 %v712
    %1497 = vmatpush1.bf16.msra.mxu0 %v711
    %1498 = vmatprep.subr.bf16.mxu0 %v714
    %1499 = vmatpush1.bf16.msra.mxu0 %v713
    %1500 = vmatprep.subr.bf16.mxu0 %v716
    %1501 = vmatpush1.bf16.msra.mxu0 %v715
    %1502 = vmatprep.subr.bf16.mxu0 %v718
    %1503 = vmatpush1.bf16.msra.mxu0 %v717
    %1504 = vmatprep.subr.bf16.mxu0 %v720
    %1505 = vmatpush1.bf16.msra.mxu0 %v719
    %1506 = vmatprep.mubr.bf16.mxu0 %v1418
    %1507 = vmatmul.mubr.bf16.gmra.mrb[0].mxu0 %v1417
    %v1508 = vpop.f32.mrb[0].mxu0
    %v1509 = vadd.f32 %v1468, %v1508
    %v1510 = vpop.f32.mrb[0].mxu0
    %v1511 = vadd.f32 %v1470, %v1510
    %v1512 = vpop.f32.mrb[0].mxu0
    %v1513 = vpop.f32.mrb[0].mxu0
    %1514 = vdwg.mxu0
    %1515 = vmatprep.subr.bf16.mxu0 %v722
    %1516 = vmatpush1.bf16.msra.mxu0 %v721
    %1517 = vmatprep.subr.bf16.mxu0 %v724
    %1518 = vmatpush1.bf16.msra.mxu0 %v723
    %1519 = vmatprep.subr.bf16.mxu0 %v726
    %1520 = vmatpush1.bf16.msra.mxu0 %v725
    %1521 = vmatprep.subr.bf16.mxu0 %v728
    %1522 = vmatpush1.bf16.msra.mxu0 %v727
    %1523 = vmatprep.subr.bf16.mxu0 %v730
    %1524 = vmatpush1.bf16.msra.mxu0 %v729
    %1525 = vmatprep.subr.bf16.mxu0 %v732
    %1526 = vmatpush1.bf16.msra.mxu0 %v731
    %1527 = vmatprep.subr.bf16.mxu0 %v734
    %1528 = vmatpush1.bf16.msra.mxu0 %v733
    %1529 = vmatprep.subr.bf16.mxu0 %v736
    %1530 = vmatpush1.bf16.msra.mxu0 %v735
    %1531 = vmatprep.subr.bf16.mxu0 %v738
    %1532 = vmatpush1.bf16.msra.mxu0 %v737
    %1533 = vmatprep.subr.bf16.mxu0 %v740
    %1534 = vmatpush1.bf16.msra.mxu0 %v739
    %1535 = vmatprep.subr.bf16.mxu0 %v742
    %1536 = vmatpush1.bf16.msra.mxu0 %v741
    %1537 = vmatprep.subr.bf16.mxu0 %v744
    %1538 = vmatpush1.bf16.msra.mxu0 %v743
    %1539 = vmatprep.subr.bf16.mxu0 %v746
    %1540 = vmatpush1.bf16.msra.mxu0 %v745
    %1541 = vmatprep.subr.bf16.mxu0 %v748
    %1542 = vmatpush1.bf16.msra.mxu0 %v747
    %1543 = vmatprep.subr.bf16.mxu0 %v750
    %1544 = vmatpush1.bf16.msra.mxu0 %v749
    %1545 = vmatprep.subr.bf16.mxu0 %v752
    %1546 = vmatpush1.bf16.msra.mxu0 %v751
    %1547 = vmatprep.mubr.bf16.mxu0 %v1420
    %1548 = vmatmul.mubr.bf16.gmra.mrb[0].mxu0 %v1419
    %v1549 = vpop.f32.mrb[0].mxu0
    %v1550 = vadd.f32 %v1509, %v1549
    %v1551 = vpop.f32.mrb[0].mxu0
    %v1552 = vadd.f32 %v1511, %v1551
    %v1553 = vpop.f32.mrb[0].mxu0
    %v1554 = vpop.f32.mrb[0].mxu0
    %1555 = vdwg.mxu0
    %1556 = vmatprep.subr.bf16.mxu0 %v754
    %1557 = vmatpush1.bf16.msra.mxu0 %v753
    %1558 = vmatprep.subr.bf16.mxu0 %v756
    %1559 = vmatpush1.bf16.msra.mxu0 %v755
    %1560 = vmatprep.subr.bf16.mxu0 %v758
    %1561 = vmatpush1.bf16.msra.mxu0 %v757
    %1562 = vmatprep.subr.bf16.mxu0 %v760
    %1563 = vmatpush1.bf16.msra.mxu0 %v759
    %1564 = vmatprep.subr.bf16.mxu0 %v762
    %1565 = vmatpush1.bf16.msra.mxu0 %v761
    %1566 = vmatprep.subr.bf16.mxu0 %v764
    %1567 = vmatpush1.bf16.msra.mxu0 %v763
    %1568 = vmatprep.subr.bf16.mxu0 %v766
    %1569 = vmatpush1.bf16.msra.mxu0 %v765
    %1570 = vmatprep.subr.bf16.mxu0 %v768
    %1571 = vmatpush1.bf16.msra.mxu0 %v767
    %1572 = vmatprep.subr.bf16.mxu0 %v770
    %1573 = vmatpush1.bf16.msra.mxu0 %v769
    %1574 = vmatprep.subr.bf16.mxu0 %v772
    %1575 = vmatpush1.bf16.msra.mxu0 %v771
    %1576 = vmatprep.subr.bf16.mxu0 %v774
    %1577 = vmatpush1.bf16.msra.mxu0 %v773
    %1578 = vmatprep.subr.bf16.mxu0 %v776
    %1579 = vmatpush1.bf16.msra.mxu0 %v775
    %1580 = vmatprep.subr.bf16.mxu0 %v778
    %1581 = vmatpush1.bf16.msra.mxu0 %v777
    %1582 = vmatprep.subr.bf16.mxu0 %v780
    %1583 = vmatpush1.bf16.msra.mxu0 %v779
    %1584 = vmatprep.subr.bf16.mxu0 %v782
    %1585 = vmatpush1.bf16.msra.mxu0 %v781
    %1586 = vmatprep.subr.bf16.mxu0 %v784
    %1587 = vmatpush1.bf16.msra.mxu0 %v783
    %1588 = vmatprep.mubr.bf16.mxu0 %v1422
    %1589 = vmatmul.mubr.bf16.gmra.mrb[0].mxu0 %v1421
    %v1590 = vpop.f32.mrb[0].mxu0
    %v1591 = vadd.f32 %v1550, %v1590
    %v1592 = vpop.f32.mrb[0].mxu0
    %v1593 = vadd.f32 %v1552, %v1592
    %v1594 = vpop.f32.mrb[0].mxu0
    %v1595 = vpop.f32.mrb[0].mxu0
    %1596 = vdwg.mxu0
    %1597 = vmatprep.subr.bf16.mxu0 %v786
    %1598 = vmatpush1.bf16.msra.mxu0 %v785
    %1599 = vmatprep.subr.bf16.mxu0 %v788
    %1600 = vmatpush1.bf16.msra.mxu0 %v787
    %1601 = vmatprep.subr.bf16.mxu0 %v790
    %1602 = vmatpush1.bf16.msra.mxu0 %v789
    %1603 = vmatprep.subr.bf16.mxu0 %v792
    %1604 = vmatpush1.bf16.msra.mxu0 %v791
    %1605 = vmatprep.subr.bf16.mxu0 %v794
    %1606 = vmatpush1.bf16.msra.mxu0 %v793
    %1607 = vmatprep.subr.bf16.mxu0 %v796
    %1608 = vmatpush1.bf16.msra.mxu0 %v795
    %1609 = vmatprep.subr.bf16.mxu0 %v798
    %1610 = vmatpush1.bf16.msra.mxu0 %v797
    %1611 = vmatprep.subr.bf16.mxu0 %v800
    %1612 = vmatpush1.bf16.msra.mxu0 %v799
    %1613 = vmatprep.subr.bf16.mxu0 0
    %1614 = vmatpush1.bf16.msra.mxu0 0
    %1615 = vmatprep.subr.bf16.mxu0 0
    %1616 = vmatpush1.bf16.msra.mxu0 0
    %1617 = vmatprep.subr.bf16.mxu0 0
    %1618 = vmatpush1.bf16.msra.mxu0 0
    %1619 = vmatprep.subr.bf16.mxu0 0
    %1620 = vmatpush1.bf16.msra.mxu0 0
    %1621 = vmatprep.subr.bf16.mxu0 0
    %1622 = vmatpush1.bf16.msra.mxu0 0
    %1623 = vmatprep.subr.bf16.mxu0 0
    %1624 = vmatpush1.bf16.msra.mxu0 0
    %1625 = vmatprep.subr.bf16.mxu0 0
    %1626 = vmatpush1.bf16.msra.mxu0 0
    %1627 = vmatprep.subr.bf16.mxu0 0
    %1628 = vmatpush1.bf16.msra.mxu0 0
    %1629 = vmatprep.mubr.bf16.mxu0 0
    %1630 = vmatmul.mubr.bf16.gmra.mrb[0].mxu0 %v1423
    %v1631 = vpop.f32.mrb[0].mxu0
    %v1632 = vadd.f32 %v1591, %v1631
    %v1633 = vpop.f32.mrb[0].mxu0
    %v1634 = vadd.f32 %v1593, %v1633
    %v1635 = vpop.f32.mrb[0].mxu0
    %v1636 = vpop.f32.mrb[0].mxu0
    %1637 = vdwg.mxu0
    %v1638 = vmax.f32 %v1393, %v1632
    %v1639 = vmax.f32 %v1394, %v1634
    %s1640 = scalar_lea.vmem [#allocation2], 108
    %v1641 = vld [vmem:[%s1640] sm:$0xff]
    %v1642 = vld [vmem:[%s1640 + $0x8] sm:$0xff]
    %v1643 = vld [vmem:[%s1640 + $0x10] sm:$0xff]
    %v1644 = vld [vmem:[%s1640 + $0x18] sm:$0xff]
    %v1645 = vld [vmem:[%s1640 + $0x20] sm:$0xf]
    %v1651 = vunpack.c.l.b16 %v1641
    %v1652 = vunpack.c.h.b16 %v1641
    %v1653 = vunpack.c.l.b16 %v1642
    %v1654 = vunpack.c.h.b16 %v1642
    %v1655 = vunpack.c.l.b16 %v1643
    %v1656 = vunpack.c.h.b16 %v1643
    %v1657 = vunpack.c.l.b16 %v1644
    %v1658 = vunpack.c.h.b16 %v1644
    %v1659 = vunpack.c.l.b16 %v1645
    %v1660 = vpack.c.b16 %v1651, %v1651
    %v1661 = vpack.c.b16 %v1652, %v1652
    %v1662 = vpack.c.b16 %v1653, %v1653
    %v1663 = vpack.c.b16 %v1654, %v1654
    %v1664 = vpack.c.b16 %v1655, %v1655
    %v1665 = vpack.c.b16 %v1656, %v1656
    %v1666 = vpack.c.b16 %v1657, %v1657
    %v1667 = vpack.c.b16 %v1658, %v1658
    %v1668 = vpack.c.b16 %v1659, %v1659
    %1678 = vmatprep.subr.bf16.mxu0 %v658
    %1679 = vmatpush1.bf16.msra.mxu0 %v657
    %1680 = vmatprep.subr.bf16.mxu0 %v660
    %1681 = vmatpush1.bf16.msra.mxu0 %v659
    %1682 = vmatprep.subr.bf16.mxu0 %v662
    %1683 = vmatpush1.bf16.msra.mxu0 %v661
    %1684 = vmatprep.subr.bf16.mxu0 %v664
    %1685 = vmatpush1.bf16.msra.mxu0 %v663
    %1686 = vmatprep.subr.bf16.mxu0 %v666
    %1687 = vmatpush1.bf16.msra.mxu0 %v665
    %1688 = vmatprep.subr.bf16.mxu0 %v668
    %1689 = vmatpush1.bf16.msra.mxu0 %v667
    %1690 = vmatprep.subr.bf16.mxu0 %v670
    %1691 = vmatpush1.bf16.msra.mxu0 %v669
    %1692 = vmatprep.subr.bf16.mxu0 %v672
    %1693 = vmatpush1.bf16.msra.mxu0 %v671
    %1694 = vmatprep.subr.bf16.mxu0 %v674
    %1695 = vmatpush1.bf16.msra.mxu0 %v673
    %1696 = vmatprep.subr.bf16.mxu0 %v676
    %1697 = vmatpush1.bf16.msra.mxu0 %v675
    %1698 = vmatprep.subr.bf16.mxu0 %v678
    %1699 = vmatpush1.bf16.msra.mxu0 %v677
    %1700 = vmatprep.subr.bf16.mxu0 %v680
    %1701 = vmatpush1.bf16.msra.mxu0 %v679
    %1702 = vmatprep.subr.bf16.mxu0 %v682
    %1703 = vmatpush1.bf16.msra.mxu0 %v681
    %1704 = vmatprep.subr.bf16.mxu0 %v684
    %1705 = vmatpush1.bf16.msra.mxu0 %v683
    %1706 = vmatprep.subr.bf16.mxu0 %v686
    %1707 = vmatpush1.bf16.msra.mxu0 %v685
    %1708 = vmatprep.subr.bf16.mxu0 %v688
    %1709 = vmatpush1.bf16.msra.mxu0 %v687
    %1710 = vmatprep.mubr.bf16.mxu0 %v1661
    %1711 = vmatmul.mubr.bf16.gmra.mrb[0].mxu0 %v1660
    %v1712 = vpop.f32.mrb[0].mxu0
    %v1713 = vadd.f32 0.0, %v1712
    %v1714 = vpop.f32.mrb[0].mxu0
    %v1715 = vadd.f32 0.0, %v1714
    %v1716 = vpop.f32.mrb[0].mxu0
    %v1717 = vpop.f32.mrb[0].mxu0
    %1718 = vdwg.mxu0
    %1719 = vmatprep.subr.bf16.mxu0 %v690
    %1720 = vmatpush1.bf16.msra.mxu0 %v689
    %1721 = vmatprep.subr.bf16.mxu0 %v692
    %1722 = vmatpush1.bf16.msra.mxu0 %v691
    %1723 = vmatprep.subr.bf16.mxu0 %v694
    %1724 = vmatpush1.bf16.msra.mxu0 %v693
    %1725 = vmatprep.subr.bf16.mxu0 %v696
    %1726 = vmatpush1.bf16.msra.mxu0 %v695
    %1727 = vmatprep.subr.bf16.mxu0 %v698
    %1728 = vmatpush1.bf16.msra.mxu0 %v697
    %1729 = vmatprep.subr.bf16.mxu0 %v700
    %1730 = vmatpush1.bf16.msra.mxu0 %v699
    %1731 = vmatprep.subr.bf16.mxu0 %v702
    %1732 = vmatpush1.bf16.msra.mxu0 %v701
    %1733 = vmatprep.subr.bf16.mxu0 %v704
    %1734 = vmatpush1.bf16.msra.mxu0 %v703
    %1735 = vmatprep.subr.bf16.mxu0 %v706
    %1736 = vmatpush1.bf16.msra.mxu0 %v705
    %1737 = vmatprep.subr.bf16.mxu0 %v708
    %1738 = vmatpush1.bf16.msra.mxu0 %v707
    %1739 = vmatprep.subr.bf16.mxu0 %v710
    %1740 = vmatpush1.bf16.msra.mxu0 %v709
    %1741 = vmatprep.subr.bf16.mxu0 %v712
    %1742 = vmatpush1.bf16.msra.mxu0 %v711
    %1743 = vmatprep.subr.bf16.mxu0 %v714
    %1744 = vmatpush1.bf16.msra.mxu0 %v713
    %1745 = vmatprep.subr.bf16.mxu0 %v716
    %1746 = vmatpush1.bf16.msra.mxu0 %v715
    %1747 = vmatprep.subr.bf16.mxu0 %v718
    %1748 = vmatpush1.bf16.msra.mxu0 %v717
    %1749 = vmatprep.subr.bf16.mxu0 %v720
    %1750 = vmatpush1.bf16.msra.mxu0 %v719
    %1751 = vmatprep.mubr.bf16.mxu0 %v1663
    %1752 = vmatmul.mubr.bf16.gmra.mrb[0].mxu0 %v1662
    %v1753 = vpop.f32.mrb[0].mxu0
    %v1754 = vadd.f32 %v1713, %v1753
    %v1755 = vpop.f32.mrb[0].mxu0
    %v1756 = vadd.f32 %v1715, %v1755
    %v1757 = vpop.f32.mrb[0].mxu0
    %v1758 = vpop.f32.mrb[0].mxu0
    %1759 = vdwg.mxu0
    %1760 = vmatprep.subr.bf16.mxu0 %v722
    %1761 = vmatpush1.bf16.msra.mxu0 %v721
    %1762 = vmatprep.subr.bf16.mxu0 %v724
    %1763 = vmatpush1.bf16.msra.mxu0 %v723
    %1764 = vmatprep.subr.bf16.mxu0 %v726
    %1765 = vmatpush1.bf16.msra.mxu0 %v725
    %1766 = vmatprep.subr.bf16.mxu0 %v728
    %1767 = vmatpush1.bf16.msra.mxu0 %v727
    %1768 = vmatprep.subr.bf16.mxu0 %v730
    %1769 = vmatpush1.bf16.msra.mxu0 %v729
    %1770 = vmatprep.subr.bf16.mxu0 %v732
    %1771 = vmatpush1.bf16.msra.mxu0 %v731
    %1772 = vmatprep.subr.bf16.mxu0 %v734
    %1773 = vmatpush1.bf16.msra.mxu0 %v733
    %1774 = vmatprep.subr.bf16.mxu0 %v736
    %1775 = vmatpush1.bf16.msra.mxu0 %v735
    %1776 = vmatprep.subr.bf16.mxu0 %v738
    %1777 = vmatpush1.bf16.msra.mxu0 %v737
    %1778 = vmatprep.subr.bf16.mxu0 %v740
    %1779 = vmatpush1.bf16.msra.mxu0 %v739
    %1780 = vmatprep.subr.bf16.mxu0 %v742
    %1781 = vmatpush1.bf16.msra.mxu0 %v741
    %1782 = vmatprep.subr.bf16.mxu0 %v744
    %1783 = vmatpush1.bf16.msra.mxu0 %v743
    %1784 = vmatprep.subr.bf16.mxu0 %v746
    %1785 = vmatpush1.bf16.msra.mxu0 %v745
    %1786 = vmatprep.subr.bf16.mxu0 %v748
    %1787 = vmatpush1.bf16.msra.mxu0 %v747
    %1788 = vmatprep.subr.bf16.mxu0 %v750
    %1789 = vmatpush1.bf16.msra.mxu0 %v749
    %1790 = vmatprep.subr.bf16.mxu0 %v752
    %1791 = vmatpush1.bf16.msra.mxu0 %v751
    %1792 = vmatprep.mubr.bf16.mxu0 %v1665
    %1793 = vmatmul.mubr.bf16.gmra.mrb[0].mxu0 %v1664
    %v1794 = vpop.f32.mrb[0].mxu0
    %v1795 = vadd.f32 %v1754, %v1794
    %v1796 = vpop.f32.mrb[0].mxu0
    %v1797 = vadd.f32 %v1756, %v1796
    %v1798 = vpop.f32.mrb[0].mxu0
    %v1799 = vpop.f32.mrb[0].mxu0
    %1800 = vdwg.mxu0
    %1801 = vmatprep.subr.bf16.mxu0 %v754
    %1802 = vmatpush1.bf16.msra.mxu0 %v753
    %1803 = vmatprep.subr.bf16.mxu0 %v756
    %1804 = vmatpush1.bf16.msra.mxu0 %v755
    %1805 = vmatprep.subr.bf16.mxu0 %v758
    %1806 = vmatpush1.bf16.msra.mxu0 %v757
    %1807 = vmatprep.subr.bf16.mxu0 %v760
    %1808 = vmatpush1.bf16.msra.mxu0 %v759
    %1809 = vmatprep.subr.bf16.mxu0 %v762
    %1810 = vmatpush1.bf16.msra.mxu0 %v761
    %1811 = vmatprep.subr.bf16.mxu0 %v764
    %1812 = vmatpush1.bf16.msra.mxu0 %v763
    %1813 = vmatprep.subr.bf16.mxu0 %v766
    %1814 = vmatpush1.bf16.msra.mxu0 %v765
    %1815 = vmatprep.subr.bf16.mxu0 %v768
    %1816 = vmatpush1.bf16.msra.mxu0 %v767
    %1817 = vmatprep.subr.bf16.mxu0 %v770
    %1818 = vmatpush1.bf16.msra.mxu0 %v769
    %1819 = vmatprep.subr.bf16.mxu0 %v772
    %1820 = vmatpush1.bf16.msra.mxu0 %v771
    %1821 = vmatprep.subr.bf16.mxu0 %v774
    %1822 = vmatpush1.bf16.msra.mxu0 %v773
    %1823 = vmatprep.subr.bf16.mxu0 %v776
    %1824 = vmatpush1.bf16.msra.mxu0 %v775
    %1825 = vmatprep.subr.bf16.mxu0 %v778
    %1826 = vmatpush1.bf16.msra.mxu0 %v777
    %1827 = vmatprep.subr.bf16.mxu0 %v780
    %1828 = vmatpush1.bf16.msra.mxu0 %v779
    %1829 = vmatprep.subr.bf16.mxu0 %v782
    %1830 = vmatpush1.bf16.msra.mxu0 %v781
    %1831 = vmatprep.subr.bf16.mxu0 %v784
    %1832 = vmatpush1.bf16.msra.mxu0 %v783
    %1833 = vmatprep.mubr.bf16.mxu0 %v1667
    %1834 = vmatmul.mubr.bf16.gmra.mrb[0].mxu0 %v1666
    %v1835 = vpop.f32.mrb[0].mxu0
    %v1836 = vadd.f32 %v1795, %v1835
    %v1837 = vpop.f32.mrb[0].mxu0
    %v1838 = vadd.f32 %v1797, %v1837
    %v1839 = vpop.f32.mrb[0].mxu0
    %v1840 = vpop.f32.mrb[0].mxu0
    %1841 = vdwg.mxu0
    %1842 = vmatprep.subr.bf16.mxu0 %v786
    %1843 = vmatpush1.bf16.msra.mxu0 %v785
    %1844 = vmatprep.subr.bf16.mxu0 %v788
    %1845 = vmatpush1.bf16.msra.mxu0 %v787
    %1846 = vmatprep.subr.bf16.mxu0 %v790
    %1847 = vmatpush1.bf16.msra.mxu0 %v789
    %1848 = vmatprep.subr.bf16.mxu0 %v792
    %1849 = vmatpush1.bf16.msra.mxu0 %v791
    %1850 = vmatprep.subr.bf16.mxu0 %v794
    %1851 = vmatpush1.bf16.msra.mxu0 %v793
    %1852 = vmatprep.subr.bf16.mxu0 %v796
    %1853 = vmatpush1.bf16.msra.mxu0 %v795
    %1854 = vmatprep.subr.bf16.mxu0 %v798
    %1855 = vmatpush1.bf16.msra.mxu0 %v797
    %1856 = vmatprep.subr.bf16.mxu0 %v800
    %1857 = vmatpush1.bf16.msra.mxu0 %v799
    %1858 = vmatprep.subr.bf16.mxu0 0
    %1859 = vmatpush1.bf16.msra.mxu0 0
    %1860 = vmatprep.subr.bf16.mxu0 0
    %1861 = vmatpush1.bf16.msra.mxu0 0
    %1862 = vmatprep.subr.bf16.mxu0 0
    %1863 = vmatpush1.bf16.msra.mxu0 0
    %1864 = vmatprep.subr.bf16.mxu0 0
    %1865 = vmatpush1.bf16.msra.mxu0 0
    %1866 = vmatprep.subr.bf16.mxu0 0
    %1867 = vmatpush1.bf16.msra.mxu0 0
    %1868 = vmatprep.subr.bf16.mxu0 0
    %1869 = vmatpush1.bf16.msra.mxu0 0
    %1870 = vmatprep.subr.bf16.mxu0 0
    %1871 = vmatpush1.bf16.msra.mxu0 0
    %1872 = vmatprep.subr.bf16.mxu0 0
    %1873 = vmatpush1.bf16.msra.mxu0 0
    %1874 = vmatprep.mubr.bf16.mxu0 0
    %1875 = vmatmul.mubr.bf16.gmra.mrb[0].mxu0 %v1668
    %v1876 = vpop.f32.mrb[0].mxu0
    %v1877 = vadd.f32 %v1836, %v1876
    %v1878 = vpop.f32.mrb[0].mxu0
    %v1879 = vadd.f32 %v1838, %v1878
    %v1880 = vpop.f32.mrb[0].mxu0
    %v1881 = vpop.f32.mrb[0].mxu0
    %1882 = vdwg.mxu0
    %v1883 = vmax.f32 %v1638, %v1877
    %v1884 = vmax.f32 %v1639, %v1879
    %v1885 = vld [vmem:[%s2] sm:$0x3]
    %v1887 = vlaneseq
    %v1888 = vshrl.u32 %v1887, 7
    %v1889 = vsub.s32 0, %v1888
    %v1890 = vrot.slane %v1885, %v1889
    %v1891 = vlaneseq
    %v1892 = vshrl.u32 %v1891, 7
    %v1893 = vsub.s32 1, %v1892
    %v1894 = vrot.slane %v1885, %v1893
    %v1897 = vadd.f32 %v1883, %v1890
    %v1898 = vadd.f32 %v1884, %v1894
    %v1899 = vmax.f32 %v1897, 0.0
    %v1900 = vmax.f32 %v1898, 0.0
    %1901 = vst [vmem:[#allocation7] sm:$0xff] %v1899
    %1902 = vst [vmem:[#allocation7 + $0x8] sm:$0xff] %v1900
    // Predicated region
    $region22: #{tpu_custom_call.1} parent=1 // pred_check
      _
    $region23: #{tpu_custom_call.1} parent=1 // pred_check_branch
      %1904 = sbr.rel (0) target = $region25
    $region24: #{tpu_custom_call.1} parent=1 // pred_region
      %s1906 = ssub.s32 256, 256
      %1907 = vsyncadd [#allocation4], %s1906
      %s1909 = sshll.u32 [#allocation7], 4
      %s1910 = int_to_ptr.vmem [resolvable:$true] %s1909
      %1912 = dma.vmem_to_hbm [thread:$0]  %s1910, 256, %s3, [#allocation4]
    $region25: #{tpu_custom_call.1} parent=1 // pred_fallthru
      _
    // Predicated region
    $region26: #{tpu_custom_call.1} parent=1 // pred_check
      _
    $region27: #{tpu_custom_call.1} parent=1 // pred_check_branch
      %1914 = sbr.rel (0) target = $region29
    $region28: #{tpu_custom_call.1} parent=1 // pred_region
      %1915 = dma.done [#allocation4], 256
    $region29: #{tpu_custom_call.1} parent=1 // pred_fallthru
      _
    %1916 = vsyncpa [#allocation3], 1
    %1917 = vsyncpa [#allocation6], 1
    %1918 = vsyncpa [#allocation4], 1

</llo_original>
